<compile_context>
chip_gen: v6e
topology: v6e:2x2x1
jax: 0.10.0
libtpu: 0.0.40
codegen_flags: <defaults>
</compile_context>

<pallas_src>
import numpy as np
import jax
import jax.numpy as jnp
from jax.experimental import pallas as pl
from jax.experimental.pallas import tpu as pltpu


def _round_up(x, m):
    return (x + m - 1) // m * m


# ---------------------------------------------------------------------------
# Pallas kernels
# ---------------------------------------------------------------------------
def conv_pool_relu_kernel(p_ref, w_ref, b_ref, o_ref):
    # p_ref: (P, TM, Kp) pooled im2col patches (K zero-padded to a lane multiple)
    # w_ref: (Kp, OCp=128) zero-padded weights   b_ref: (1, OCp)
    # o_ref: (TM, OCp) = relu( max_pool(conv) + bias )
    P, TM, Kp = p_ref.shape
    OCp = o_ref.shape[-1]
    # One long MXU push stream instead of P tiny dots (layout no-op reshape:
    # TM is a multiple of 8, Kp a multiple of 128).
    pm = p_ref[...].reshape(P * TM, Kp)
    y = jnp.dot(pm, w_ref[...], preferred_element_type=jnp.float32)
    y = y.reshape(P, TM, OCp)
    acc = jnp.max(y, axis=0)                          # pool over 4 offsets (VPU)
    o_ref[...] = jnp.maximum(acc + b_ref[...], 0.0)   # lane-dense (128-wide) store


def mlp_head_kernel(x_ref, w1_ref, b1_ref, w2_ref, b2_ref, o_ref):
    # x: (N, 320); w1: (320, 128); w2: (128, 128).  Padded class columns have a
    # -1e30 bias so they contribute nothing to the log_softmax.
    h = jnp.dot(x_ref[...], w1_ref[...], preferred_element_type=jnp.float32) + b1_ref[...]
    h = jnp.maximum(h, 0.0)
    y = jnp.dot(h, w2_ref[...], preferred_element_type=jnp.float32) + b2_ref[...]
    m = jnp.max(y, axis=-1, keepdims=True)
    e = jnp.exp(y - m)
    lse = jnp.log(jnp.sum(e, axis=-1, keepdims=True)) + m
    o_ref[...] = y - lse


# ---------------------------------------------------------------------------
# Wrappers
# ---------------------------------------------------------------------------
def _conv_pool_relu(patches, w_flat, b, oc):
    """patches: (P, M, Kf) f32; w_flat: (Kf, oc); b: (oc,) -> (M, oc)."""
    P, M, Kf = patches.shape
    Kp = _round_up(Kf, 128)          # lane-dense K (25->128, 250->256)
    OCp = 128                        # lane-dense output channels
    TM = min(512, _round_up(M, 8))   # row tile (multiple of 8)
    M_pad = _round_up(M, TM)

    patches_p = jnp.pad(patches, ((0, 0), (0, M_pad - M), (0, Kp - Kf)))
    w_p = jnp.pad(w_flat, ((0, Kp - Kf), (0, OCp - oc)))
    b_p = jnp.pad(b, (0, OCp - oc)).reshape(1, OCp)

    out = pl.pallas_call(
        conv_pool_relu_kernel,
        out_shape=jax.ShapeDtypeStruct((M_pad, OCp), jnp.float32),
        grid=(M_pad // TM,),
        in_specs=[
            pl.BlockSpec((P, TM, Kp), lambda i: (0, i, 0)),
            pl.BlockSpec((Kp, OCp), lambda i: (0, 0)),
            pl.BlockSpec((1, OCp), lambda i: (0, 0)),
        ],
        out_specs=pl.BlockSpec((TM, OCp), lambda i: (i, 0)),
        compiler_params=pltpu.CompilerParams(dimension_semantics=("parallel",)),
    )(patches_p, w_p, b_p)
    return out[:M, :oc]


def _mlp_head(x, w1, b1, w2, b2):
    """x: (N, 320); w1: (320, H); w2: (H, NC) -> (N, NC) log-probs."""
    N = x.shape[0]
    H, NC = w1.shape[1], w2.shape[1]
    Hp, NCp = 128, 128
    w1p = jnp.pad(w1, ((0, 0), (0, Hp - H)))
    b1p = jnp.pad(b1, (0, Hp - H)).reshape(1, Hp)
    w2p = jnp.pad(w2, ((0, Hp - H), (0, NCp - NC)))
    b2p = jnp.concatenate(
        [b2, jnp.full((NCp - NC,), -1e30, dtype=jnp.float32)]).reshape(1, NCp)

    out = pl.pallas_call(
        mlp_head_kernel,
        out_shape=jax.ShapeDtypeStruct((N, NCp), jnp.float32),
        grid=(1,),
        in_specs=[
            pl.BlockSpec((N, x.shape[1]), lambda i: (0, 0)),
            pl.BlockSpec((x.shape[1], Hp), lambda i: (0, 0)),
            pl.BlockSpec((1, Hp), lambda i: (0, 0)),
            pl.BlockSpec((Hp, NCp), lambda i: (0, 0)),
            pl.BlockSpec((1, NCp), lambda i: (0, 0)),
        ],
        out_specs=pl.BlockSpec((N, NCp), lambda i: (0, 0)),
    )(x, w1p, b1p, w2p, b2p)
    return out[:, :NC]


def _build_pooled_patches_nhwc(x, K, pool, OP):
    """x: (N, H, W, C) NHWC -> (pool*pool, N*OP*OP, K*K*C); feature order (kh,kw,c)."""
    N, H, W, C = x.shape
    plist = []
    for ph in range(pool):
        for pw in range(pool):
            feats = []
            for kh in range(K):
                for kw in range(K):
                    sl = x[:, ph + kh:ph + kh + pool * OP:pool,
                              pw + kw:pw + kw + pool * OP:pool, :]   # (N,OP,OP,C)
                    feats.append(sl)
            f = jnp.stack(feats, axis=3)                  # (N, OP, OP, K*K, C)
            plist.append(f.reshape(N * OP * OP, K * K * C))
    return jnp.stack(plist, axis=0)


def model_forward(x, params):
    w1c, b1c, w2c, b2c, w1f, b1f, w2f, b2f = params
    N = x.shape[0]
    x_nhwc = jnp.transpose(x, (0, 2, 3, 1))                       # (N,28,28,1)

    # conv1 (1->10, k=5) + maxpool2 + relu
    p1 = _build_pooled_patches_nhwc(x_nhwc, K=5, pool=2, OP=12)   # (4, N*144, 25)
    w1_flat = jnp.transpose(w1c, (2, 3, 1, 0)).reshape(25, 10)    # (kh,kw,c)-order
    o1 = _conv_pool_relu(p1, w1_flat, b1c, oc=10)                 # (N*144, 10)
    a1 = o1.reshape(N, 12, 12, 10)                                # NHWC, no transpose

    # conv2 (10->20, k=5) + [dropout2d: identity] + maxpool2 + relu
    p2 = _build_pooled_patches_nhwc(a1, K=5, pool=2, OP=4)        # (4, N*16, 250)
    w2_flat = jnp.transpose(w2c, (2, 3, 1, 0)).reshape(250, 20)
    o2 = _conv_pool_relu(p2, w2_flat, b2c, oc=20)                 # (N*16, 20)
    flat = o2.reshape(N, 320)                                     # NHWC flatten order

    # fc1 columns reordered from NCHW-flatten to NHWC-flatten so results match
    # torch's x.view(-1, 320); then relu + [dropout: identity] + fc2 + log_softmax.
    w1f_nhwc = w1f.reshape(50, 20, 4, 4).transpose(0, 2, 3, 1).reshape(50, 320)
    return _mlp_head(flat, w1f_nhwc.T, b1f, w2f.T, b2f)           # (N, 10)


# ---------------------------------------------------------------------------
# Pure-JAX reference (for correctness check)
# ---------------------------------------------------------------------------
def ref_forward(x, params):
    w1c, b1c, w2c, b2c, w1f, b1f, w2f, b2f = params
    dn = ('NCHW', 'OIHW', 'NCHW')
    c1 = jax.lax.conv_general_dilated(x, w1c, (1, 1), 'VALID', dimension_numbers=dn)
    c1 = c1 + b1c[None, :, None, None]
    p1 = jax.lax.reduce_window(c1, -jnp.inf, jax.lax.max, (1, 1, 2, 2), (1, 1, 2, 2), 'VALID')
    r1 = jnp.maximum(p1, 0.0)
    c2 = jax.lax.conv_general_dilated(r1, w2c, (1, 1), 'VALID', dimension_numbers=dn)
    c2 = c2 + b2c[None, :, None, None]
    p2 = jax.lax.reduce_window(c2, -jnp.inf, jax.lax.max, (1, 1, 2, 2), (1, 1, 2, 2), 'VALID')
    r2 = jnp.maximum(p2, 0.0)
    flat = r2.reshape(-1, 320)
    h = jnp.maximum(flat @ w1f.T + b1f, 0.0)
    y = h @ w2f.T + b2f
    return y - jax.scipy.special.logsumexp(y, axis=1, keepdims=True)


# ---------------------------------------------------------------------------
# Main
# ---------------------------------------------------------------------------
if __name__ == "__main__":
    key = jax.random.PRNGKey(0)
    ks = jax.random.split(key, 9)

    def uinit(k, shape, fan_in):
        bound = 1.0 / np.sqrt(fan_in)
        return jax.random.uniform(k, shape, jnp.float32, -bound, bound)

    params = (
        uinit(ks[0], (10, 1, 5, 5), 25),    # conv1.weight
        uinit(ks[1], (10,), 25),            # conv1.bias
        uinit(ks[2], (20, 10, 5, 5), 250),  # conv2.weight
        uinit(ks[3], (20,), 250),           # conv2.bias
        uinit(ks[4], (50, 320), 320),       # fc1.weight
        uinit(ks[5], (50,), 320),           # fc1.bias
        uinit(ks[6], (10, 50), 50),         # fc2.weight
        uinit(ks[7], (10,), 50),            # fc2.bias
    )

    # MNIST-shaped input (the 320-dim flatten implies 28x28 single-channel)
    x = jax.random.normal(ks[8], (2, 1, 28, 28), dtype=jnp.float32)

    out = jax.block_until_ready(jax.jit(model_forward)(x, params))
    ref = jax.block_until_ready(ref_forward(x, params))

    assert out.shape == (2, 10)
    err = np.max(np.abs(np.asarray(out) - np.asarray(ref)))
    assert np.allclose(np.asarray(out), np.asarray(ref), atol=1e-4, rtol=1e-4), \
        f"max abs err {err}"

    print("KERNEL_OK")
</pallas_src>

<mosaic_0001>
module attributes {stable_mosaic.version = 11 : i64} {
  func.func @conv_pool_relu_kernel(%arg0: i32, %arg1: memref<4x288x128xf32, #tpu.memory_space<vmem>>, %arg2: memref<128x128xf32, #tpu.memory_space<vmem>>, %arg3: memref<1x128xf32, #tpu.memory_space<vmem>>, %arg4: memref<288x128xf32, #tpu.memory_space<vmem>>) attributes {dimension_semantics = [#tpu.dimension_semantics<parallel>], iteration_bounds = array<i64: 1>, scalar_prefetch = 0 : i64, scratch_operands = 0 : i64, tpu.core_type = #tpu.core_type<tc>, window_params = [{transform_indices = @transform_0, window_bounds = array<i64: 4, 288, 128>}, {pipeline_mode = #tpu.pipeline_mode<synchronous>, transform_indices = @transform_1, window_bounds = array<i64: 128, 128>}, {pipeline_mode = #tpu.pipeline_mode<synchronous>, transform_indices = @transform_2, window_bounds = array<i64: 1, 128>}, {transform_indices = @transform_3, window_bounds = array<i64: 288, 128>}]} {
    %c0 = arith.constant 0 : index
    %c0_0 = arith.constant 0 : index
    %c0_1 = arith.constant 0 : index
    %0 = vector.load %arg1[%c0, %c0_0, %c0_1] : memref<4x288x128xf32, #tpu.memory_space<vmem>>, vector<4x288x128xf32>
    %1 = vector.shape_cast %0 : vector<4x288x128xf32> to vector<1152x128xf32>
    %c0_2 = arith.constant 0 : index
    %c0_3 = arith.constant 0 : index
    %2 = vector.load %arg2[%c0_2, %c0_3] : memref<128x128xf32, #tpu.memory_space<vmem>>, vector<128x128xf32>
    %cst = arith.constant dense<0.000000e+00> : vector<1152x128xf32>
    %3 = tpu.matmul %1, %2, %cst {dimension_numbers = #tpu.dot_dimension_numbers<[1], [0], [0], [1], [0, 0, 1, 1], [], []>} : vector<1152x128xf32>, vector<128x128xf32>, vector<1152x128xf32> -> vector<1152x128xf32>
    %4 = vector.shape_cast %3 : vector<1152x128xf32> to vector<4x288x128xf32>
    %cst_4 = arith.constant dense<0xFF800000> : vector<288x128xf32>
    %5 = vector.multi_reduction <maximumf>, %4, %cst_4 [0] : vector<4x288x128xf32> to vector<288x128xf32>
    %c0_5 = arith.constant 0 : index
    %c0_6 = arith.constant 0 : index
    %6 = vector.load %arg3[%c0_5, %c0_6] : memref<1x128xf32, #tpu.memory_space<vmem>>, vector<1x128xf32>
    %7 = vector.broadcast %6 : vector<1x128xf32> to vector<288x128xf32>
    %8 = arith.addf %5, %7 : vector<288x128xf32>
    %cst_7 = arith.constant 0.000000e+00 : f32
    %9 = vector.broadcast %cst_7 : f32 to vector<288x128xf32>
    %10 = arith.maximumf %8, %9 : vector<288x128xf32>
    %c0_8 = arith.constant 0 : index
    %c0_9 = arith.constant 0 : index
    %11 = vector.load %arg4[%c0_8, %c0_9] : memref<288x128xf32, #tpu.memory_space<vmem>>, vector<288x128xf32>
    tpu.vector_store %arg4[%c0_8, %c0_9], %10 {strides = array<i32>} : memref<288x128xf32, #tpu.memory_space<vmem>>, vector<288x128xf32>,
    return
  }
  func.func @transform_0(%arg0: i32) -> (i32, i32, i32) {
    %c0_i32 = arith.constant 0 : i32
    %c0_i32_0 = arith.constant 0 : i32
    %c0_i32_1 = arith.constant 0 : i32
    return %c0_i32, %arg0, %c0_i32_0 : i32, i32, i32
  }
  func.func @transform_1(%arg0: i32) -> (i32, i32) {
    %c0_i32 = arith.constant 0 : i32
    %c0_i32_0 = arith.constant 0 : i32
    %c0_i32_1 = arith.constant 0 : i32
    return %c0_i32, %c0_i32_0 : i32, i32
  }
  func.func @transform_2(%arg0: i32) -> (i32, i32) {
    %c0_i32 = arith.constant 0 : i32
    %c0_i32_0 = arith.constant 0 : i32
    %c0_i32_1 = arith.constant 0 : i32
    return %c0_i32, %c0_i32_0 : i32, i32
  }
  func.func @transform_3(%arg0: i32) -> (i32, i32) {
    %c0_i32 = arith.constant 0 : i32
    %c0_i32_0 = arith.constant 0 : i32
    return %arg0, %c0_i32 : i32, i32
  }
}

module attributes {stable_mosaic.version = 11 : i64} {
  func.func @conv_pool_relu_kernel(%arg0: i32, %arg1: memref<4x32x256xf32, #tpu.memory_space<vmem>>, %arg2: memref<256x128xf32, #tpu.memory_space<vmem>>, %arg3: memref<1x128xf32, #tpu.memory_space<vmem>>, %arg4: memref<32x128xf32, #tpu.memory_space<vmem>>) attributes {dimension_semantics = [#tpu.dimension_semantics<parallel>], iteration_bounds = array<i64: 1>, scalar_prefetch = 0 : i64, scratch_operands = 0 : i64, tpu.core_type = #tpu.core_type<tc>, window_params = [{transform_indices = @transform_0, window_bounds = array<i64: 4, 32, 256>}, {pipeline_mode = #tpu.pipeline_mode<synchronous>, transform_indices = @transform_1, window_bounds = array<i64: 256, 128>}, {pipeline_mode = #tpu.pipeline_mode<synchronous>, transform_indices = @transform_2, window_bounds = array<i64: 1, 128>}, {transform_indices = @transform_3, window_bounds = array<i64: 32, 128>}]} {
    %c0 = arith.constant 0 : index
    %c0_0 = arith.constant 0 : index
    %c0_1 = arith.constant 0 : index
    %0 = vector.load %arg1[%c0, %c0_0, %c0_1] : memref<4x32x256xf32, #tpu.memory_space<vmem>>, vector<4x32x256xf32>
    %1 = vector.shape_cast %0 : vector<4x32x256xf32> to vector<128x256xf32>
    %c0_2 = arith.constant 0 : index
    %c0_3 = arith.constant 0 : index
    %2 = vector.load %arg2[%c0_2, %c0_3] : memref<256x128xf32, #tpu.memory_space<vmem>>, vector<256x128xf32>
    %cst = arith.constant dense<0.000000e+00> : vector<128x128xf32>
    %3 = tpu.matmul %1, %2, %cst {dimension_numbers = #tpu.dot_dimension_numbers<[1], [0], [0], [1], [0, 0, 1, 1], [], []>} : vector<128x256xf32>, vector<256x128xf32>, vector<128x128xf32> -> vector<128x128xf32>
    %4 = vector.shape_cast %3 : vector<128x128xf32> to vector<4x32x128xf32>
    %cst_4 = arith.constant dense<0xFF800000> : vector<32x128xf32>
    %5 = vector.multi_reduction <maximumf>, %4, %cst_4 [0] : vector<4x32x128xf32> to vector<32x128xf32>
    %c0_5 = arith.constant 0 : index
    %c0_6 = arith.constant 0 : index
    %6 = vector.load %arg3[%c0_5, %c0_6] : memref<1x128xf32, #tpu.memory_space<vmem>>, vector<1x128xf32>
    %7 = vector.broadcast %6 : vector<1x128xf32> to vector<32x128xf32>
    %8 = arith.addf %5, %7 : vector<32x128xf32>
    %cst_7 = arith.constant 0.000000e+00 : f32
    %9 = vector.broadcast %cst_7 : f32 to vector<32x128xf32>
    %10 = arith.maximumf %8, %9 : vector<32x128xf32>
    %c0_8 = arith.constant 0 : index
    %c0_9 = arith.constant 0 : index
    %11 = vector.load %arg4[%c0_8, %c0_9] : memref<32x128xf32, #tpu.memory_space<vmem>>, vector<32x128xf32>
    tpu.vector_store %arg4[%c0_8, %c0_9], %10 {strides = array<i32>} : memref<32x128xf32, #tpu.memory_space<vmem>>, vector<32x128xf32>,
    return
  }
  func.func @transform_0(%arg0: i32) -> (i32, i32, i32) {
    %c0_i32 = arith.constant 0 : i32
    %c0_i32_0 = arith.constant 0 : i32
    %c0_i32_1 = arith.constant 0 : i32
    return %c0_i32, %arg0, %c0_i32_0 : i32, i32, i32
  }
  func.func @transform_1(%arg0: i32) -> (i32, i32) {
    %c0_i32 = arith.constant 0 : i32
    %c0_i32_0 = arith.constant 0 : i32
    %c0_i32_1 = arith.constant 0 : i32
    return %c0_i32, %c0_i32_0 : i32, i32
  }
  func.func @transform_2(%arg0: i32) -> (i32, i32) {
    %c0_i32 = arith.constant 0 : i32
    %c0_i32_0 = arith.constant 0 : i32
    %c0_i32_1 = arith.constant 0 : i32
    return %c0_i32, %c0_i32_0 : i32, i32
  }
  func.func @transform_3(%arg0: i32) -> (i32, i32) {
    %c0_i32 = arith.constant 0 : i32
    %c0_i32_0 = arith.constant 0 : i32
    return %arg0, %c0_i32 : i32, i32
  }
}

module attributes {stable_mosaic.version = 11 : i64} {
  func.func @mlp_head_kernel(%arg0: i32, %arg1: memref<2x320xf32, #tpu.memory_space<vmem>>, %arg2: memref<320x128xf32, #tpu.memory_space<vmem>>, %arg3: memref<1x128xf32, #tpu.memory_space<vmem>>, %arg4: memref<128x128xf32, #tpu.memory_space<vmem>>, %arg5: memref<1x128xf32, #tpu.memory_space<vmem>>, %arg6: memref<2x128xf32, #tpu.memory_space<vmem>>) attributes {dimension_semantics = [#tpu.dimension_semantics<arbitrary>], iteration_bounds = array<i64: 1>, scalar_prefetch = 0 : i64, scratch_operands = 0 : i64, tpu.core_type = #tpu.core_type<tc>, window_params = [{pipeline_mode = #tpu.pipeline_mode<synchronous>, transform_indices = @transform_0, window_bounds = array<i64: 2, 320>}, {pipeline_mode = #tpu.pipeline_mode<synchronous>, transform_indices = @transform_1, window_bounds = array<i64: 320, 128>}, {pipeline_mode = #tpu.pipeline_mode<synchronous>, transform_indices = @transform_2, window_bounds = array<i64: 1, 128>}, {pipeline_mode = #tpu.pipeline_mode<synchronous>, transform_indices = @transform_3, window_bounds = array<i64: 128, 128>}, {pipeline_mode = #tpu.pipeline_mode<synchronous>, transform_indices = @transform_4, window_bounds = array<i64: 1, 128>}, {pipeline_mode = #tpu.pipeline_mode<synchronous>, transform_indices = @transform_5, window_bounds = array<i64: 2, 128>}]} {
    %c0 = arith.constant 0 : index
    %c0_0 = arith.constant 0 : index
    %0 = vector.load %arg1[%c0, %c0_0] : memref<2x320xf32, #tpu.memory_space<vmem>>, vector<2x320xf32>
    %c0_1 = arith.constant 0 : index
    %c0_2 = arith.constant 0 : index
    %1 = vector.load %arg2[%c0_1, %c0_2] : memref<320x128xf32, #tpu.memory_space<vmem>>, vector<320x128xf32>
    %cst = arith.constant dense<0.000000e+00> : vector<2x128xf32>
    %2 = tpu.matmul %0, %1, %cst {dimension_numbers = #tpu.dot_dimension_numbers<[1], [0], [0], [1], [0, 0, 1, 1], [], []>} : vector<2x320xf32>, vector<320x128xf32>, vector<2x128xf32> -> vector<2x128xf32>
    %c0_3 = arith.constant 0 : index
    %c0_4 = arith.constant 0 : index
    %3 = vector.load %arg3[%c0_3, %c0_4] : memref<1x128xf32, #tpu.memory_space<vmem>>, vector<1x128xf32>
    %4 = vector.broadcast %3 : vector<1x128xf32> to vector<2x128xf32>
    %5 = arith.addf %2, %4 : vector<2x128xf32>
    %cst_5 = arith.constant 0.000000e+00 : f32
    %6 = vector.broadcast %cst_5 : f32 to vector<2x128xf32>
    %7 = arith.maximumf %5, %6 : vector<2x128xf32>
    %c0_6 = arith.constant 0 : index
    %c0_7 = arith.constant 0 : index
    %8 = vector.load %arg4[%c0_6, %c0_7] : memref<128x128xf32, #tpu.memory_space<vmem>>, vector<128x128xf32>
    %cst_8 = arith.constant dense<0.000000e+00> : vector<2x128xf32>
    %9 = tpu.matmul %7, %8, %cst_8 {dimension_numbers = #tpu.dot_dimension_numbers<[1], [0], [0], [1], [0, 0, 1, 1], [], []>} : vector<2x128xf32>, vector<128x128xf32>, vector<2x128xf32> -> vector<2x128xf32>
    %c0_9 = arith.constant 0 : index
    %c0_10 = arith.constant 0 : index
    %10 = vector.load %arg5[%c0_9, %c0_10] : memref<1x128xf32, #tpu.memory_space<vmem>>, vector<1x128xf32>
    %11 = vector.broadcast %10 : vector<1x128xf32> to vector<2x128xf32>
    %12 = arith.addf %9, %11 : vector<2x128xf32>
    %cst_11 = arith.constant dense<0xFF800000> : vector<2xf32>
    %13 = vector.multi_reduction <maximumf>, %12, %cst_11 [1] : vector<2x128xf32> to vector<2xf32>
    %14 = vector.shape_cast %13 : vector<2xf32> to vector<2x1xf32>
    %15 = vector.broadcast %14 : vector<2x1xf32> to vector<2x128xf32>
    %16 = arith.subf %12, %15 : vector<2x128xf32>
    %17 = math.exp %16 : vector<2x128xf32>
    %cst_12 = arith.constant dense<0.000000e+00> : vector<2xf32>
    %18 = vector.multi_reduction <add>, %17, %cst_12 [1] : vector<2x128xf32> to vector<2xf32>
    %19 = vector.shape_cast %18 : vector<2xf32> to vector<2x1xf32>
    %20 = math.log %19 : vector<2x1xf32>
    %21 = arith.addf %20, %14 : vector<2x1xf32>
    %22 = vector.broadcast %21 : vector<2x1xf32> to vector<2x128xf32>
    %23 = arith.subf %12, %22 : vector<2x128xf32>
    %c0_13 = arith.constant 0 : index
    %c0_14 = arith.constant 0 : index
    %24 = vector.load %arg6[%c0_13, %c0_14] : memref<2x128xf32, #tpu.memory_space<vmem>>, vector<2x128xf32>
    tpu.vector_store %arg6[%c0_13, %c0_14], %23 {strides = array<i32>} : memref<2x128xf32, #tpu.memory_space<vmem>>, vector<2x128xf32>,
    return
  }
  func.func @transform_0(%arg0: i32) -> (i32, i32) {
    %c0_i32 = arith.constant 0 : i32
    %c0_i32_0 = arith.constant 0 : i32
    %c0_i32_1 = arith.constant 0 : i32
    return %c0_i32, %c0_i32_0 : i32, i32
  }
  func.func @transform_1(%arg0: i32) -> (i32, i32) {
    %c0_i32 = arith.constant 0 : i32
    %c0_i32_0 = arith.constant 0 : i32
    %c0_i32_1 = arith.constant 0 : i32
    return %c0_i32, %c0_i32_0 : i32, i32
  }
  func.func @transform_2(%arg0: i32) -> (i32, i32) {
    %c0_i32 = arith.constant 0 : i32
    %c0_i32_0 = arith.constant 0 : i32
    %c0_i32_1 = arith.constant 0 : i32
    return %c0_i32, %c0_i32_0 : i32, i32
  }
  func.func @transform_3(%arg0: i32) -> (i32, i32) {
    %c0_i32 = arith.constant 0 : i32
    %c0_i32_0 = arith.constant 0 : i32
    %c0_i32_1 = arith.constant 0 : i32
    return %c0_i32, %c0_i32_0 : i32, i32
  }
  func.func @transform_4(%arg0: i32) -> (i32, i32) {
    %c0_i32 = arith.constant 0 : i32
    %c0_i32_0 = arith.constant 0 : i32
    %c0_i32_1 = arith.constant 0 : i32
    return %c0_i32, %c0_i32_0 : i32, i32
  }
  func.func @transform_5(%arg0: i32) -> (i32, i32) {
    %c0_i32 = arith.constant 0 : i32
    %c0_i32_0 = arith.constant 0 : i32
    %c0_i32_1 = arith.constant 0 : i32
    return %c0_i32, %c0_i32_0 : i32, i32
  }
}

</mosaic_0001>

<llo_original>
// kernel: model_forward.3
$region0: #{model_forward.3}
  #allocation0 [shape = 'u32[]', space=smem, size = 0x4, offset = 0x4, fixed_abs, tag = 'smem constant byte address 0x4 - core index']
  #allocation1 [shape = 'u32[144,128]{1,0:T(1,128)}', space=vmem, size = 0x12000, scoped, tag = 'internal scratch']
  %s0 = inlined_call_operand.vmem [shape: f32[4,288,128], index: 0, kind: input, shape index: {}]
  %s1 = inlined_call_operand.vmem [shape: f32[128,128], index: 1, kind: input, shape index: {}]
  %s2 = inlined_call_operand.vmem [shape: f32[1,128], index: 2, kind: input, shape index: {}]
  %s3 = inlined_call_operand.vmem [shape: f32[288,128], index: 3, kind: output, shape index: {}]
  %s4 = sld [smem:[#allocation0]]
  $region22: #{model_forward.3} parent=0
    _
  %s6 = ssub.s32 1, %s4
  %s7 = scalar_select 0, %s6, %s4
  // Predicated region
  $region2: #{model_forward.3} parent=0 // pred_check
    _
  $region3: #{model_forward.3} parent=0 // pred_check_branch
    %9 = sbr.rel (0) target = $region5
  $region4: #{model_forward.3} parent=0 // pred_region
    _
  $region5: #{model_forward.3} parent=0 // pred_fallthru
    _
  // Predicated region
  $region6: #{model_forward.3} parent=0 // pred_check
    _
  $region7: #{model_forward.3} parent=0 // pred_check_branch
    %11 = sbr.rel (0) target = $region9
  $region8: #{model_forward.3} parent=0 // pred_region
    _
  $region9: #{model_forward.3} parent=0 // pred_fallthru
    _
  // Predicated region
  $region10: #{model_forward.3} parent=0 // pred_check
    _
  $region11: #{model_forward.3} parent=0 // pred_check_branch
    %13 = sbr.rel (0) target = $region13
  $region12: #{model_forward.3} parent=0 // pred_region
    _
  $region13: #{model_forward.3} parent=0 // pred_fallthru
    _
  %v14 = vld [vmem:[%s0] sm:$0xff]
  %v15 = vld [vmem:[%s0 + $0x8] sm:$0xff]
  %v16 = vld [vmem:[%s0 + $0x10] sm:$0xff]
  %v17 = vld [vmem:[%s0 + $0x18] sm:$0xff]
  %v18 = vld [vmem:[%s0 + $0x20] sm:$0xff]
  %v19 = vld [vmem:[%s0 + $0x28] sm:$0xff]
  %v20 = vld [vmem:[%s0 + $0x30] sm:$0xff]
  %v21 = vld [vmem:[%s0 + $0x38] sm:$0xff]
  %v22 = vld [vmem:[%s0 + $0x40] sm:$0xff]
  %v23 = vld [vmem:[%s0 + $0x48] sm:$0xff]
  %v24 = vld [vmem:[%s0 + $0x50] sm:$0xff]
  %v25 = vld [vmem:[%s0 + $0x58] sm:$0xff]
  %v26 = vld [vmem:[%s0 + $0x60] sm:$0xff]
  %v27 = vld [vmem:[%s0 + $0x68] sm:$0xff]
  %v28 = vld [vmem:[%s0 + $0x70] sm:$0xff]
  %v29 = vld [vmem:[%s0 + $0x78] sm:$0xff]
  %v30 = vld [vmem:[%s0 + $0x80] sm:$0xff]
  %v31 = vld [vmem:[%s0 + $0x88] sm:$0xff]
  %v32 = vld [vmem:[%s0 + $0x90] sm:$0xff]
  %v33 = vld [vmem:[%s0 + $0x98] sm:$0xff]
  %v34 = vld [vmem:[%s0 + $0xa0] sm:$0xff]
  %v35 = vld [vmem:[%s0 + $0xa8] sm:$0xff]
  %v36 = vld [vmem:[%s0 + $0xb0] sm:$0xff]
  %v37 = vld [vmem:[%s0 + $0xb8] sm:$0xff]
  %v38 = vld [vmem:[%s0 + $0xc0] sm:$0xff]
  %v39 = vld [vmem:[%s0 + $0xc8] sm:$0xff]
  %v40 = vld [vmem:[%s0 + $0xd0] sm:$0xff]
  %v41 = vld [vmem:[%s0 + $0xd8] sm:$0xff]
  %v42 = vld [vmem:[%s0 + $0xe0] sm:$0xff]
  %v43 = vld [vmem:[%s0 + $0xe8] sm:$0xff]
  %v44 = vld [vmem:[%s0 + $0xf0] sm:$0xff]
  %v45 = vld [vmem:[%s0 + $0xf8] sm:$0xff]
  %v46 = vld [vmem:[%s0 + $0x100] sm:$0xff]
  %v47 = vld [vmem:[%s0 + $0x108] sm:$0xff]
  %v48 = vld [vmem:[%s0 + $0x110] sm:$0xff]
  %v49 = vld [vmem:[%s0 + $0x118] sm:$0xff]
  %v50 = vld [vmem:[%s0 + $0x120] sm:$0xff]
  %v51 = vld [vmem:[%s0 + $0x128] sm:$0xff]
  %v52 = vld [vmem:[%s0 + $0x130] sm:$0xff]
  %v53 = vld [vmem:[%s0 + $0x138] sm:$0xff]
  %v54 = vld [vmem:[%s0 + $0x140] sm:$0xff]
  %v55 = vld [vmem:[%s0 + $0x148] sm:$0xff]
  %v56 = vld [vmem:[%s0 + $0x150] sm:$0xff]
  %v57 = vld [vmem:[%s0 + $0x158] sm:$0xff]
  %v58 = vld [vmem:[%s0 + $0x160] sm:$0xff]
  %v59 = vld [vmem:[%s0 + $0x168] sm:$0xff]
  %v60 = vld [vmem:[%s0 + $0x170] sm:$0xff]
  %v61 = vld [vmem:[%s0 + $0x178] sm:$0xff]
  %v62 = vld [vmem:[%s0 + $0x180] sm:$0xff]
  %v63 = vld [vmem:[%s0 + $0x188] sm:$0xff]
  %v64 = vld [vmem:[%s0 + $0x190] sm:$0xff]
  %v65 = vld [vmem:[%s0 + $0x198] sm:$0xff]
  %v66 = vld [vmem:[%s0 + $0x1a0] sm:$0xff]
  %v67 = vld [vmem:[%s0 + $0x1a8] sm:$0xff]
  %v68 = vld [vmem:[%s0 + $0x1b0] sm:$0xff]
  %v69 = vld [vmem:[%s0 + $0x1b8] sm:$0xff]
  %v70 = vld [vmem:[%s0 + $0x1c0] sm:$0xff]
  %v71 = vld [vmem:[%s0 + $0x1c8] sm:$0xff]
  %v72 = vld [vmem:[%s0 + $0x1d0] sm:$0xff]
  %v73 = vld [vmem:[%s0 + $0x1d8] sm:$0xff]
  %v74 = vld [vmem:[%s0 + $0x1e0] sm:$0xff]
  %v75 = vld [vmem:[%s0 + $0x1e8] sm:$0xff]
  %v76 = vld [vmem:[%s0 + $0x1f0] sm:$0xff]
  %v77 = vld [vmem:[%s0 + $0x1f8] sm:$0xff]
  %v78 = vld [vmem:[%s0 + $0x200] sm:$0xff]
  %v79 = vld [vmem:[%s0 + $0x208] sm:$0xff]
  %v80 = vld [vmem:[%s0 + $0x210] sm:$0xff]
  %v81 = vld [vmem:[%s0 + $0x218] sm:$0xff]
  %v82 = vld [vmem:[%s0 + $0x220] sm:$0xff]
  %v83 = vld [vmem:[%s0 + $0x228] sm:$0xff]
  %v84 = vld [vmem:[%s0 + $0x230] sm:$0xff]
  %v85 = vld [vmem:[%s0 + $0x238] sm:$0xff]
  %v86 = vld [vmem:[%s0 + $0x240] sm:$0xff]
  %v87 = vld [vmem:[%s0 + $0x248] sm:$0xff]
  %v88 = vld [vmem:[%s0 + $0x250] sm:$0xff]
  %v89 = vld [vmem:[%s0 + $0x258] sm:$0xff]
  %v90 = vld [vmem:[%s0 + $0x260] sm:$0xff]
  %v91 = vld [vmem:[%s0 + $0x268] sm:$0xff]
  %v92 = vld [vmem:[%s0 + $0x270] sm:$0xff]
  %v93 = vld [vmem:[%s0 + $0x278] sm:$0xff]
  %v94 = vld [vmem:[%s0 + $0x280] sm:$0xff]
  %v95 = vld [vmem:[%s0 + $0x288] sm:$0xff]
  %v96 = vld [vmem:[%s0 + $0x290] sm:$0xff]
  %v97 = vld [vmem:[%s0 + $0x298] sm:$0xff]
  %v98 = vld [vmem:[%s0 + $0x2a0] sm:$0xff]
  %v99 = vld [vmem:[%s0 + $0x2a8] sm:$0xff]
  %v100 = vld [vmem:[%s0 + $0x2b0] sm:$0xff]
  %v101 = vld [vmem:[%s0 + $0x2b8] sm:$0xff]
  %v102 = vld [vmem:[%s0 + $0x2c0] sm:$0xff]
  %v103 = vld [vmem:[%s0 + $0x2c8] sm:$0xff]
  %v104 = vld [vmem:[%s0 + $0x2d0] sm:$0xff]
  %v105 = vld [vmem:[%s0 + $0x2d8] sm:$0xff]
  %v106 = vld [vmem:[%s0 + $0x2e0] sm:$0xff]
  %v107 = vld [vmem:[%s0 + $0x2e8] sm:$0xff]
  %v108 = vld [vmem:[%s0 + $0x2f0] sm:$0xff]
  %v109 = vld [vmem:[%s0 + $0x2f8] sm:$0xff]
  %v110 = vld [vmem:[%s0 + $0x300] sm:$0xff]
  %v111 = vld [vmem:[%s0 + $0x308] sm:$0xff]
  %v112 = vld [vmem:[%s0 + $0x310] sm:$0xff]
  %v113 = vld [vmem:[%s0 + $0x318] sm:$0xff]
  %v114 = vld [vmem:[%s0 + $0x320] sm:$0xff]
  %v115 = vld [vmem:[%s0 + $0x328] sm:$0xff]
  %v116 = vld [vmem:[%s0 + $0x330] sm:$0xff]
  %v117 = vld [vmem:[%s0 + $0x338] sm:$0xff]
  %v118 = vld [vmem:[%s0 + $0x340] sm:$0xff]
  %v119 = vld [vmem:[%s0 + $0x348] sm:$0xff]
  %v120 = vld [vmem:[%s0 + $0x350] sm:$0xff]
  %v121 = vld [vmem:[%s0 + $0x358] sm:$0xff]
  %v122 = vld [vmem:[%s0 + $0x360] sm:$0xff]
  %v123 = vld [vmem:[%s0 + $0x368] sm:$0xff]
  %v124 = vld [vmem:[%s0 + $0x370] sm:$0xff]
  %v125 = vld [vmem:[%s0 + $0x378] sm:$0xff]
  %v126 = vld [vmem:[%s0 + $0x380] sm:$0xff]
  %v127 = vld [vmem:[%s0 + $0x388] sm:$0xff]
  %v128 = vld [vmem:[%s0 + $0x390] sm:$0xff]
  %v129 = vld [vmem:[%s0 + $0x398] sm:$0xff]
  %v130 = vld [vmem:[%s0 + $0x3a0] sm:$0xff]
  %v131 = vld [vmem:[%s0 + $0x3a8] sm:$0xff]
  %v132 = vld [vmem:[%s0 + $0x3b0] sm:$0xff]
  %v133 = vld [vmem:[%s0 + $0x3b8] sm:$0xff]
  %v134 = vld [vmem:[%s0 + $0x3c0] sm:$0xff]
  %v135 = vld [vmem:[%s0 + $0x3c8] sm:$0xff]
  %v136 = vld [vmem:[%s0 + $0x3d0] sm:$0xff]
  %v137 = vld [vmem:[%s0 + $0x3d8] sm:$0xff]
  %v138 = vld [vmem:[%s0 + $0x3e0] sm:$0xff]
  %v139 = vld [vmem:[%s0 + $0x3e8] sm:$0xff]
  %v140 = vld [vmem:[%s0 + $0x3f0] sm:$0xff]
  %v141 = vld [vmem:[%s0 + $0x3f8] sm:$0xff]
  %v142 = vld [vmem:[%s0 + $0x400] sm:$0xff]
  %v143 = vld [vmem:[%s0 + $0x408] sm:$0xff]
  %v144 = vld [vmem:[%s0 + $0x410] sm:$0xff]
  %v145 = vld [vmem:[%s0 + $0x418] sm:$0xff]
  %v146 = vld [vmem:[%s0 + $0x420] sm:$0xff]
  %v147 = vld [vmem:[%s0 + $0x428] sm:$0xff]
  %v148 = vld [vmem:[%s0 + $0x430] sm:$0xff]
  %v149 = vld [vmem:[%s0 + $0x438] sm:$0xff]
  %v150 = vld [vmem:[%s0 + $0x440] sm:$0xff]
  %v151 = vld [vmem:[%s0 + $0x448] sm:$0xff]
  %v152 = vld [vmem:[%s0 + $0x450] sm:$0xff]
  %v153 = vld [vmem:[%s0 + $0x458] sm:$0xff]
  %v154 = vld [vmem:[%s0 + $0x460] sm:$0xff]
  %v155 = vld [vmem:[%s0 + $0x468] sm:$0xff]
  %v156 = vld [vmem:[%s0 + $0x470] sm:$0xff]
  %v157 = vld [vmem:[%s0 + $0x478] sm:$0xff]
  %v158 = vld [vmem:[%s1] sm:$0xff]
  %v159 = vld [vmem:[%s1 + $0x8] sm:$0xff]
  %v160 = vld [vmem:[%s1 + $0x10] sm:$0xff]
  %v161 = vld [vmem:[%s1 + $0x18] sm:$0xff]
  %v162 = vld [vmem:[%s1 + $0x20] sm:$0xff]
  %v163 = vld [vmem:[%s1 + $0x28] sm:$0xff]
  %v164 = vld [vmem:[%s1 + $0x30] sm:$0xff]
  %v165 = vld [vmem:[%s1 + $0x38] sm:$0xff]
  %v166 = vld [vmem:[%s1 + $0x40] sm:$0xff]
  %v167 = vld [vmem:[%s1 + $0x48] sm:$0xff]
  %v168 = vld [vmem:[%s1 + $0x50] sm:$0xff]
  %v169 = vld [vmem:[%s1 + $0x58] sm:$0xff]
  %v170 = vld [vmem:[%s1 + $0x60] sm:$0xff]
  %v171 = vld [vmem:[%s1 + $0x68] sm:$0xff]
  %v172 = vld [vmem:[%s1 + $0x70] sm:$0xff]
  %v173 = vld [vmem:[%s1 + $0x78] sm:$0xff]
  %174 = vmatprep.subr.mxu0 0.0
  %175 = vmatpush1.msra.mxu0 %v173
  %176 = vmatprep.subr.mxu0 0.0
  %177 = vmatpush1.msra.mxu0 %v172
  %178 = vmatprep.subr.mxu0 0.0
  %179 = vmatpush1.msra.mxu0 %v171
  %180 = vmatprep.subr.mxu0 0.0
  %181 = vmatpush1.msra.mxu0 %v170
  %182 = vmatprep.subr.mxu0 0.0
  %183 = vmatpush1.msra.mxu0 %v169
  %184 = vmatprep.subr.mxu0 0.0
  %185 = vmatpush1.msra.mxu0 %v168
  %186 = vmatprep.subr.mxu0 0.0
  %187 = vmatpush1.msra.mxu0 %v167
  %188 = vmatprep.subr.mxu0 0.0
  %189 = vmatpush1.msra.mxu0 %v166
  %190 = vmatprep.subr.mxu0 0.0
  %191 = vmatpush1.msra.mxu0 %v165
  %192 = vmatprep.subr.mxu0 0.0
  %193 = vmatpush1.msra.mxu0 %v164
  %194 = vmatprep.subr.mxu0 0.0
  %195 = vmatpush1.msra.mxu0 %v163
  %196 = vmatprep.subr.mxu0 0.0
  %197 = vmatpush1.msra.mxu0 %v162
  %198 = vmatprep.subr.mxu0 0.0
  %199 = vmatpush1.msra.mxu0 %v161
  %200 = vmatprep.subr.mxu0 0.0
  %201 = vmatpush1.msra.mxu0 %v160
  %202 = vmatprep.subr.mxu0 0.0
  %203 = vmatpush1.msra.mxu0 %v159
  %204 = vmatprep.subr.mxu0 0.0
  %205 = vmatpush1.msra.mxu0 %v158
  %206 = vmatprep.subr.mxu0 0.0
  %207 = vmatpush2.msra.mxu0 0.0
  %208 = vmatprep.subr.mxu0 0.0
  %209 = vmatpush2.msra.mxu0 0.0
  %210 = vmatprep.subr.mxu0 0.0
  %211 = vmatpush2.msra.mxu0 0.0
  %212 = vmatprep.subr.mxu0 0.0
  %213 = vmatpush2.msra.mxu0 0.0
  %214 = vmatprep.subr.mxu0 0.0
  %215 = vmatpush2.msra.mxu0 0.0
  %216 = vmatprep.subr.mxu0 0.0
  %217 = vmatpush2.msra.mxu0 0.0
  %218 = vmatprep.subr.mxu0 0.0
  %219 = vmatpush2.msra.mxu0 0.0
  %220 = vmatprep.subr.mxu0 0.0
  %221 = vmatpush2.msra.mxu0 0.0
  %222 = vmatprep.subr.mxu0 0.0
  %223 = vmatpush2.msra.mxu0 0.0
  %224 = vmatprep.subr.mxu0 0.0
  %225 = vmatpush2.msra.mxu0 0.0
  %226 = vmatprep.subr.mxu0 0.0
  %227 = vmatpush2.msra.mxu0 0.0
  %228 = vmatprep.subr.mxu0 0.0
  %229 = vmatpush2.msra.mxu0 0.0
  %230 = vmatprep.subr.mxu0 0.0
  %231 = vmatpush2.msra.mxu0 0.0
  %232 = vmatprep.subr.mxu0 0.0
  %233 = vmatpush2.msra.mxu0 0.0
  %234 = vmatprep.subr.mxu0 0.0
  %235 = vmatpush2.msra.mxu0 0.0
  %236 = vmatprep.subr.mxu0 0.0
  %237 = vmatpush2.msra.mxu0 0.0
  %238 = vmatprep.mubr.f32.mxu0 0.0
  %239 = vmatmul.mubr.f32.gmra.mxu0 %v14
  %v240 = vpop.f32.mrf.mxu0
  %v241 = vadd.f32 0.0, %v240
  %v242 = vpop.f32.mrf.mxu0
  %243 = vmatprep.mubr.f32.mxu0 0.0
  %244 = vmatmul.mubr.f32.gmra.mxu0 %v15
  %v245 = vpop.f32.mrf.mxu0
  %v246 = vadd.f32 0.0, %v245
  %v247 = vpop.f32.mrf.mxu0
  %248 = vmatprep.mubr.f32.mxu0 0.0
  %249 = vmatmul.mubr.f32.gmra.mxu0 %v16
  %v250 = vpop.f32.mrf.mxu0
  %v251 = vadd.f32 0.0, %v250
  %v252 = vpop.f32.mrf.mxu0
  %253 = vmatprep.mubr.f32.mxu0 0.0
  %254 = vmatmul.mubr.f32.gmra.mxu0 %v17
  %v255 = vpop.f32.mrf.mxu0
  %v256 = vadd.f32 0.0, %v255
  %v257 = vpop.f32.mrf.mxu0
  %258 = vmatprep.mubr.f32.mxu0 0.0
  %259 = vmatmul.mubr.f32.gmra.mxu0 %v18
  %v260 = vpop.f32.mrf.mxu0
  %v261 = vadd.f32 0.0, %v260
  %v262 = vpop.f32.mrf.mxu0
  %263 = vmatprep.mubr.f32.mxu0 0.0
  %264 = vmatmul.mubr.f32.gmra.mxu0 %v19
  %v265 = vpop.f32.mrf.mxu0
  %v266 = vadd.f32 0.0, %v265
  %v267 = vpop.f32.mrf.mxu0
  %268 = vmatprep.mubr.f32.mxu0 0.0
  %269 = vmatmul.mubr.f32.gmra.mxu0 %v20
  %v270 = vpop.f32.mrf.mxu0
  %v271 = vadd.f32 0.0, %v270
  %v272 = vpop.f32.mrf.mxu0
  %273 = vmatprep.mubr.f32.mxu0 0.0
  %274 = vmatmul.mubr.f32.gmra.mxu0 %v21
  %v275 = vpop.f32.mrf.mxu0
  %v276 = vadd.f32 0.0, %v275
  %v277 = vpop.f32.mrf.mxu0
  %278 = vmatprep.mubr.f32.mxu0 0.0
  %279 = vmatmul.mubr.f32.gmra.mxu0 %v22
  %v280 = vpop.f32.mrf.mxu0
  %v281 = vadd.f32 0.0, %v280
  %v282 = vpop.f32.mrf.mxu0
  %283 = vmatprep.mubr.f32.mxu0 0.0
  %284 = vmatmul.mubr.f32.gmra.mxu0 %v23
  %v285 = vpop.f32.mrf.mxu0
  %v286 = vadd.f32 0.0, %v285
  %v287 = vpop.f32.mrf.mxu0
  %288 = vmatprep.mubr.f32.mxu0 0.0
  %289 = vmatmul.mubr.f32.gmra.mxu0 %v24
  %v290 = vpop.f32.mrf.mxu0
  %v291 = vadd.f32 0.0, %v290
  %v292 = vpop.f32.mrf.mxu0
  %293 = vmatprep.mubr.f32.mxu0 0.0
  %294 = vmatmul.mubr.f32.gmra.mxu0 %v25
  %v295 = vpop.f32.mrf.mxu0
  %v296 = vadd.f32 0.0, %v295
  %v297 = vpop.f32.mrf.mxu0
  %298 = vmatprep.mubr.f32.mxu0 0.0
  %299 = vmatmul.mubr.f32.gmra.mxu0 %v26
  %v300 = vpop.f32.mrf.mxu0
  %v301 = vadd.f32 0.0, %v300
  %v302 = vpop.f32.mrf.mxu0
  %303 = vmatprep.mubr.f32.mxu0 0.0
  %304 = vmatmul.mubr.f32.gmra.mxu0 %v27
  %v305 = vpop.f32.mrf.mxu0
  %v306 = vadd.f32 0.0, %v305
  %v307 = vpop.f32.mrf.mxu0
  %308 = vmatprep.mubr.f32.mxu0 0.0
  %309 = vmatmul.mubr.f32.gmra.mxu0 %v28
  %v310 = vpop.f32.mrf.mxu0
  %v311 = vadd.f32 0.0, %v310
  %v312 = vpop.f32.mrf.mxu0
  %313 = vmatprep.mubr.f32.mxu0 0.0
  %314 = vmatmul.mubr.f32.gmra.mxu0 %v29
  %v315 = vpop.f32.mrf.mxu0
  %v316 = vadd.f32 0.0, %v315
  %v317 = vpop.f32.mrf.mxu0
  %318 = vmatprep.mubr.f32.mxu0 0.0
  %319 = vmatmul.mubr.f32.gmra.mxu0 %v30
  %v320 = vpop.f32.mrf.mxu0
  %v321 = vadd.f32 0.0, %v320
  %v322 = vpop.f32.mrf.mxu0
  %323 = vmatprep.mubr.f32.mxu0 0.0
  %324 = vmatmul.mubr.f32.gmra.mxu0 %v31
  %v325 = vpop.f32.mrf.mxu0
  %v326 = vadd.f32 0.0, %v325
  %v327 = vpop.f32.mrf.mxu0
  %328 = vmatprep.mubr.f32.mxu0 0.0
  %329 = vmatmul.mubr.f32.gmra.mxu0 %v32
  %v330 = vpop.f32.mrf.mxu0
  %v331 = vadd.f32 0.0, %v330
  %v332 = vpop.f32.mrf.mxu0
  %333 = vmatprep.mubr.f32.mxu0 0.0
  %334 = vmatmul.mubr.f32.gmra.mxu0 %v33
  %v335 = vpop.f32.mrf.mxu0
  %v336 = vadd.f32 0.0, %v335
  %v337 = vpop.f32.mrf.mxu0
  %338 = vmatprep.mubr.f32.mxu0 0.0
  %339 = vmatmul.mubr.f32.gmra.mxu0 %v34
  %v340 = vpop.f32.mrf.mxu0
  %v341 = vadd.f32 0.0, %v340
  %v342 = vpop.f32.mrf.mxu0
  %343 = vmatprep.mubr.f32.mxu0 0.0
  %344 = vmatmul.mubr.f32.gmra.mxu0 %v35
  %v345 = vpop.f32.mrf.mxu0
  %v346 = vadd.f32 0.0, %v345
  %v347 = vpop.f32.mrf.mxu0
  %348 = vmatprep.mubr.f32.mxu0 0.0
  %349 = vmatmul.mubr.f32.gmra.mxu0 %v36
  %v350 = vpop.f32.mrf.mxu0
  %v351 = vadd.f32 0.0, %v350
  %v352 = vpop.f32.mrf.mxu0
  %353 = vmatprep.mubr.f32.mxu0 0.0
  %354 = vmatmul.mubr.f32.gmra.mxu0 %v37
  %v355 = vpop.f32.mrf.mxu0
  %v356 = vadd.f32 0.0, %v355
  %v357 = vpop.f32.mrf.mxu0
  %358 = vmatprep.mubr.f32.mxu0 0.0
  %359 = vmatmul.mubr.f32.gmra.mxu0 %v38
  %v360 = vpop.f32.mrf.mxu0
  %v361 = vadd.f32 0.0, %v360
  %v362 = vpop.f32.mrf.mxu0
  %363 = vmatprep.mubr.f32.mxu0 0.0
  %364 = vmatmul.mubr.f32.gmra.mxu0 %v39
  %v365 = vpop.f32.mrf.mxu0
  %v366 = vadd.f32 0.0, %v365
  %v367 = vpop.f32.mrf.mxu0
  %368 = vmatprep.mubr.f32.mxu0 0.0
  %369 = vmatmul.mubr.f32.gmra.mxu0 %v40
  %v370 = vpop.f32.mrf.mxu0
  %v371 = vadd.f32 0.0, %v370
  %v372 = vpop.f32.mrf.mxu0
  %373 = vmatprep.mubr.f32.mxu0 0.0
  %374 = vmatmul.mubr.f32.gmra.mxu0 %v41
  %v375 = vpop.f32.mrf.mxu0
  %v376 = vadd.f32 0.0, %v375
  %v377 = vpop.f32.mrf.mxu0
  %378 = vmatprep.mubr.f32.mxu0 0.0
  %379 = vmatmul.mubr.f32.gmra.mxu0 %v42
  %v380 = vpop.f32.mrf.mxu0
  %v381 = vadd.f32 0.0, %v380
  %v382 = vpop.f32.mrf.mxu0
  %383 = vmatprep.mubr.f32.mxu0 0.0
  %384 = vmatmul.mubr.f32.gmra.mxu0 %v43
  %v385 = vpop.f32.mrf.mxu0
  %v386 = vadd.f32 0.0, %v385
  %v387 = vpop.f32.mrf.mxu0
  %388 = vmatprep.mubr.f32.mxu0 0.0
  %389 = vmatmul.mubr.f32.gmra.mxu0 %v44
  %v390 = vpop.f32.mrf.mxu0
  %v391 = vadd.f32 0.0, %v390
  %v392 = vpop.f32.mrf.mxu0
  %393 = vmatprep.mubr.f32.mxu0 0.0
  %394 = vmatmul.mubr.f32.gmra.mxu0 %v45
  %v395 = vpop.f32.mrf.mxu0
  %v396 = vadd.f32 0.0, %v395
  %v397 = vpop.f32.mrf.mxu0
  %398 = vmatprep.mubr.f32.mxu0 0.0
  %399 = vmatmul.mubr.f32.gmra.mxu0 %v46
  %v400 = vpop.f32.mrf.mxu0
  %v401 = vadd.f32 0.0, %v400
  %v402 = vpop.f32.mrf.mxu0
  %403 = vmatprep.mubr.f32.mxu0 0.0
  %404 = vmatmul.mubr.f32.gmra.mxu0 %v47
  %v405 = vpop.f32.mrf.mxu0
  %v406 = vadd.f32 0.0, %v405
  %v407 = vpop.f32.mrf.mxu0
  %408 = vmatprep.mubr.f32.mxu0 0.0
  %409 = vmatmul.mubr.f32.gmra.mxu0 %v48
  %v410 = vpop.f32.mrf.mxu0
  %v411 = vadd.f32 0.0, %v410
  %v412 = vpop.f32.mrf.mxu0
  %413 = vmatprep.mubr.f32.mxu0 0.0
  %414 = vmatmul.mubr.f32.gmra.mxu0 %v49
  %v415 = vpop.f32.mrf.mxu0
  %v416 = vadd.f32 0.0, %v415
  %v417 = vpop.f32.mrf.mxu0
  %418 = vmatprep.mubr.f32.mxu0 0.0
  %419 = vmatmul.mubr.f32.gmra.mxu0 %v50
  %v420 = vpop.f32.mrf.mxu0
  %v421 = vadd.f32 0.0, %v420
  %v422 = vpop.f32.mrf.mxu0
  %423 = vmatprep.mubr.f32.mxu0 0.0
  %424 = vmatmul.mubr.f32.gmra.mxu0 %v51
  %v425 = vpop.f32.mrf.mxu0
  %v426 = vadd.f32 0.0, %v425
  %v427 = vpop.f32.mrf.mxu0
  %428 = vmatprep.mubr.f32.mxu0 0.0
  %429 = vmatmul.mubr.f32.gmra.mxu0 %v52
  %v430 = vpop.f32.mrf.mxu0
  %v431 = vadd.f32 0.0, %v430
  %v432 = vpop.f32.mrf.mxu0
  %433 = vmatprep.mubr.f32.mxu0 0.0
  %434 = vmatmul.mubr.f32.gmra.mxu0 %v53
  %v435 = vpop.f32.mrf.mxu0
  %v436 = vadd.f32 0.0, %v435
  %v437 = vpop.f32.mrf.mxu0
  %438 = vmatprep.mubr.f32.mxu0 0.0
  %439 = vmatmul.mubr.f32.gmra.mxu0 %v54
  %v440 = vpop.f32.mrf.mxu0
  %v441 = vadd.f32 0.0, %v440
  %v442 = vpop.f32.mrf.mxu0
  %443 = vmatprep.mubr.f32.mxu0 0.0
  %444 = vmatmul.mubr.f32.gmra.mxu0 %v55
  %v445 = vpop.f32.mrf.mxu0
  %v446 = vadd.f32 0.0, %v445
  %v447 = vpop.f32.mrf.mxu0
  %448 = vmatprep.mubr.f32.mxu0 0.0
  %449 = vmatmul.mubr.f32.gmra.mxu0 %v56
  %v450 = vpop.f32.mrf.mxu0
  %v451 = vadd.f32 0.0, %v450
  %v452 = vpop.f32.mrf.mxu0
  %453 = vmatprep.mubr.f32.mxu0 0.0
  %454 = vmatmul.mubr.f32.gmra.mxu0 %v57
  %v455 = vpop.f32.mrf.mxu0
  %v456 = vadd.f32 0.0, %v455
  %v457 = vpop.f32.mrf.mxu0
  %458 = vmatprep.mubr.f32.mxu0 0.0
  %459 = vmatmul.mubr.f32.gmra.mxu0 %v58
  %v460 = vpop.f32.mrf.mxu0
  %v461 = vadd.f32 0.0, %v460
  %v462 = vpop.f32.mrf.mxu0
  %463 = vmatprep.mubr.f32.mxu0 0.0
  %464 = vmatmul.mubr.f32.gmra.mxu0 %v59
  %v465 = vpop.f32.mrf.mxu0
  %v466 = vadd.f32 0.0, %v465
  %v467 = vpop.f32.mrf.mxu0
  %468 = vmatprep.mubr.f32.mxu0 0.0
  %469 = vmatmul.mubr.f32.gmra.mxu0 %v60
  %v470 = vpop.f32.mrf.mxu0
  %v471 = vadd.f32 0.0, %v470
  %v472 = vpop.f32.mrf.mxu0
  %473 = vmatprep.mubr.f32.mxu0 0.0
  %474 = vmatmul.mubr.f32.gmra.mxu0 %v61
  %v475 = vpop.f32.mrf.mxu0
  %v476 = vadd.f32 0.0, %v475
  %v477 = vpop.f32.mrf.mxu0
  %478 = vmatprep.mubr.f32.mxu0 0.0
  %479 = vmatmul.mubr.f32.gmra.mxu0 %v62
  %v480 = vpop.f32.mrf.mxu0
  %v481 = vadd.f32 0.0, %v480
  %v482 = vpop.f32.mrf.mxu0
  %483 = vmatprep.mubr.f32.mxu0 0.0
  %484 = vmatmul.mubr.f32.gmra.mxu0 %v63
  %v485 = vpop.f32.mrf.mxu0
  %v486 = vadd.f32 0.0, %v485
  %v487 = vpop.f32.mrf.mxu0
  %488 = vmatprep.mubr.f32.mxu0 0.0
  %489 = vmatmul.mubr.f32.gmra.mxu0 %v64
  %v490 = vpop.f32.mrf.mxu0
  %v491 = vadd.f32 0.0, %v490
  %v492 = vpop.f32.mrf.mxu0
  %493 = vmatprep.mubr.f32.mxu0 0.0
  %494 = vmatmul.mubr.f32.gmra.mxu0 %v65
  %v495 = vpop.f32.mrf.mxu0
  %v496 = vadd.f32 0.0, %v495
  %v497 = vpop.f32.mrf.mxu0
  %498 = vmatprep.mubr.f32.mxu0 0.0
  %499 = vmatmul.mubr.f32.gmra.mxu0 %v66
  %v500 = vpop.f32.mrf.mxu0
  %v501 = vadd.f32 0.0, %v500
  %v502 = vpop.f32.mrf.mxu0
  %503 = vmatprep.mubr.f32.mxu0 0.0
  %504 = vmatmul.mubr.f32.gmra.mxu0 %v67
  %v505 = vpop.f32.mrf.mxu0
  %v506 = vadd.f32 0.0, %v505
  %v507 = vpop.f32.mrf.mxu0
  %508 = vmatprep.mubr.f32.mxu0 0.0
  %509 = vmatmul.mubr.f32.gmra.mxu0 %v68
  %v510 = vpop.f32.mrf.mxu0
  %v511 = vadd.f32 0.0, %v510
  %v512 = vpop.f32.mrf.mxu0
  %513 = vmatprep.mubr.f32.mxu0 0.0
  %514 = vmatmul.mubr.f32.gmra.mxu0 %v69
  %v515 = vpop.f32.mrf.mxu0
  %v516 = vadd.f32 0.0, %v515
  %v517 = vpop.f32.mrf.mxu0
  %518 = vmatprep.mubr.f32.mxu0 0.0
  %519 = vmatmul.mubr.f32.gmra.mxu0 %v70
  %v520 = vpop.f32.mrf.mxu0
  %v521 = vadd.f32 0.0, %v520
  %v522 = vpop.f32.mrf.mxu0
  %523 = vmatprep.mubr.f32.mxu0 0.0
  %524 = vmatmul.mubr.f32.gmra.mxu0 %v71
  %v525 = vpop.f32.mrf.mxu0
  %v526 = vadd.f32 0.0, %v525
  %v527 = vpop.f32.mrf.mxu0
  %528 = vmatprep.mubr.f32.mxu0 0.0
  %529 = vmatmul.mubr.f32.gmra.mxu0 %v72
  %v530 = vpop.f32.mrf.mxu0
  %v531 = vadd.f32 0.0, %v530
  %v532 = vpop.f32.mrf.mxu0
  %533 = vmatprep.mubr.f32.mxu0 0.0
  %534 = vmatmul.mubr.f32.gmra.mxu0 %v73
  %v535 = vpop.f32.mrf.mxu0
  %v536 = vadd.f32 0.0, %v535
  %v537 = vpop.f32.mrf.mxu0
  %538 = vmatprep.mubr.f32.mxu0 0.0
  %539 = vmatmul.mubr.f32.gmra.mxu0 %v74
  %v540 = vpop.f32.mrf.mxu0
  %v541 = vadd.f32 0.0, %v540
  %v542 = vpop.f32.mrf.mxu0
  %543 = vmatprep.mubr.f32.mxu0 0.0
  %544 = vmatmul.mubr.f32.gmra.mxu0 %v75
  %v545 = vpop.f32.mrf.mxu0
  %v546 = vadd.f32 0.0, %v545
  %v547 = vpop.f32.mrf.mxu0
  %548 = vmatprep.mubr.f32.mxu0 0.0
  %549 = vmatmul.mubr.f32.gmra.mxu0 %v76
  %v550 = vpop.f32.mrf.mxu0
  %v551 = vadd.f32 0.0, %v550
  %v552 = vpop.f32.mrf.mxu0
  %553 = vmatprep.mubr.f32.mxu0 0.0
  %554 = vmatmul.mubr.f32.gmra.mxu0 %v77
  %v555 = vpop.f32.mrf.mxu0
  %v556 = vadd.f32 0.0, %v555
  %v557 = vpop.f32.mrf.mxu0
  %558 = vmatprep.mubr.f32.mxu0 0.0
  %559 = vmatmul.mubr.f32.gmra.mxu0 %v78
  %v560 = vpop.f32.mrf.mxu0
  %v561 = vadd.f32 0.0, %v560
  %v562 = vpop.f32.mrf.mxu0
  %563 = vmatprep.mubr.f32.mxu0 0.0
  %564 = vmatmul.mubr.f32.gmra.mxu0 %v79
  %v565 = vpop.f32.mrf.mxu0
  %v566 = vadd.f32 0.0, %v565
  %v567 = vpop.f32.mrf.mxu0
  %568 = vmatprep.mubr.f32.mxu0 0.0
  %569 = vmatmul.mubr.f32.gmra.mxu0 %v80
  %v570 = vpop.f32.mrf.mxu0
  %v571 = vadd.f32 0.0, %v570
  %v572 = vpop.f32.mrf.mxu0
  %573 = vmatprep.mubr.f32.mxu0 0.0
  %574 = vmatmul.mubr.f32.gmra.mxu0 %v81
  %v575 = vpop.f32.mrf.mxu0
  %v576 = vadd.f32 0.0, %v575
  %v577 = vpop.f32.mrf.mxu0
  %578 = vmatprep.mubr.f32.mxu0 0.0
  %579 = vmatmul.mubr.f32.gmra.mxu0 %v82
  %v580 = vpop.f32.mrf.mxu0
  %v581 = vadd.f32 0.0, %v580
  %v582 = vpop.f32.mrf.mxu0
  %583 = vmatprep.mubr.f32.mxu0 0.0
  %584 = vmatmul.mubr.f32.gmra.mxu0 %v83
  %v585 = vpop.f32.mrf.mxu0
  %v586 = vadd.f32 0.0, %v585
  %v587 = vpop.f32.mrf.mxu0
  %588 = vmatprep.mubr.f32.mxu0 0.0
  %589 = vmatmul.mubr.f32.gmra.mxu0 %v84
  %v590 = vpop.f32.mrf.mxu0
  %v591 = vadd.f32 0.0, %v590
  %v592 = vpop.f32.mrf.mxu0
  %593 = vmatprep.mubr.f32.mxu0 0.0
  %594 = vmatmul.mubr.f32.gmra.mxu0 %v85
  %v595 = vpop.f32.mrf.mxu0
  %v596 = vadd.f32 0.0, %v595
  %v597 = vpop.f32.mrf.mxu0
  %598 = vmatprep.mubr.f32.mxu0 0.0
  %599 = vmatmul.mubr.f32.gmra.mxu0 %v86
  %v600 = vpop.f32.mrf.mxu0
  %v601 = vadd.f32 0.0, %v600
  %v602 = vpop.f32.mrf.mxu0
  %603 = vmatprep.mubr.f32.mxu0 0.0
  %604 = vmatmul.mubr.f32.gmra.mxu0 %v87
  %v605 = vpop.f32.mrf.mxu0
  %v606 = vadd.f32 0.0, %v605
  %v607 = vpop.f32.mrf.mxu0
  %608 = vmatprep.mubr.f32.mxu0 0.0
  %609 = vmatmul.mubr.f32.gmra.mxu0 %v88
  %v610 = vpop.f32.mrf.mxu0
  %v611 = vadd.f32 0.0, %v610
  %v612 = vpop.f32.mrf.mxu0
  %613 = vmatprep.mubr.f32.mxu0 0.0
  %614 = vmatmul.mubr.f32.gmra.mxu0 %v89
  %v615 = vpop.f32.mrf.mxu0
  %v616 = vadd.f32 0.0, %v615
  %v617 = vpop.f32.mrf.mxu0
  %618 = vmatprep.mubr.f32.mxu0 0.0
  %619 = vmatmul.mubr.f32.gmra.mxu0 %v90
  %v620 = vpop.f32.mrf.mxu0
  %v621 = vadd.f32 0.0, %v620
  %v622 = vpop.f32.mrf.mxu0
  %623 = vmatprep.mubr.f32.mxu0 0.0
  %624 = vmatmul.mubr.f32.gmra.mxu0 %v91
  %v625 = vpop.f32.mrf.mxu0
  %v626 = vadd.f32 0.0, %v625
  %v627 = vpop.f32.mrf.mxu0
  %628 = vmatprep.mubr.f32.mxu0 0.0
  %629 = vmatmul.mubr.f32.gmra.mxu0 %v92
  %v630 = vpop.f32.mrf.mxu0
  %v631 = vadd.f32 0.0, %v630
  %v632 = vpop.f32.mrf.mxu0
  %633 = vmatprep.mubr.f32.mxu0 0.0
  %634 = vmatmul.mubr.f32.gmra.mxu0 %v93
  %v635 = vpop.f32.mrf.mxu0
  %v636 = vadd.f32 0.0, %v635
  %v637 = vpop.f32.mrf.mxu0
  %638 = vmatprep.mubr.f32.mxu0 0.0
  %639 = vmatmul.mubr.f32.gmra.mxu0 %v94
  %v640 = vpop.f32.mrf.mxu0
  %v641 = vadd.f32 0.0, %v640
  %v642 = vpop.f32.mrf.mxu0
  %643 = vmatprep.mubr.f32.mxu0 0.0
  %644 = vmatmul.mubr.f32.gmra.mxu0 %v95
  %v645 = vpop.f32.mrf.mxu0
  %v646 = vadd.f32 0.0, %v645
  %v647 = vpop.f32.mrf.mxu0
  %648 = vmatprep.mubr.f32.mxu0 0.0
  %649 = vmatmul.mubr.f32.gmra.mxu0 %v96
  %v650 = vpop.f32.mrf.mxu0
  %v651 = vadd.f32 0.0, %v650
  %v652 = vpop.f32.mrf.mxu0
  %653 = vmatprep.mubr.f32.mxu0 0.0
  %654 = vmatmul.mubr.f32.gmra.mxu0 %v97
  %v655 = vpop.f32.mrf.mxu0
  %v656 = vadd.f32 0.0, %v655
  %v657 = vpop.f32.mrf.mxu0
  %658 = vmatprep.mubr.f32.mxu0 0.0
  %659 = vmatmul.mubr.f32.gmra.mxu0 %v98
  %v660 = vpop.f32.mrf.mxu0
  %v661 = vadd.f32 0.0, %v660
  %v662 = vpop.f32.mrf.mxu0
  %663 = vmatprep.mubr.f32.mxu0 0.0
  %664 = vmatmul.mubr.f32.gmra.mxu0 %v99
  %v665 = vpop.f32.mrf.mxu0
  %v666 = vadd.f32 0.0, %v665
  %v667 = vpop.f32.mrf.mxu0
  %668 = vmatprep.mubr.f32.mxu0 0.0
  %669 = vmatmul.mubr.f32.gmra.mxu0 %v100
  %v670 = vpop.f32.mrf.mxu0
  %v671 = vadd.f32 0.0, %v670
  %v672 = vpop.f32.mrf.mxu0
  %673 = vmatprep.mubr.f32.mxu0 0.0
  %674 = vmatmul.mubr.f32.gmra.mxu0 %v101
  %v675 = vpop.f32.mrf.mxu0
  %v676 = vadd.f32 0.0, %v675
  %v677 = vpop.f32.mrf.mxu0
  %678 = vmatprep.mubr.f32.mxu0 0.0
  %679 = vmatmul.mubr.f32.gmra.mxu0 %v102
  %v680 = vpop.f32.mrf.mxu0
  %v681 = vadd.f32 0.0, %v680
  %v682 = vpop.f32.mrf.mxu0
  %683 = vmatprep.mubr.f32.mxu0 0.0
  %684 = vmatmul.mubr.f32.gmra.mxu0 %v103
  %v685 = vpop.f32.mrf.mxu0
  %v686 = vadd.f32 0.0, %v685
  %v687 = vpop.f32.mrf.mxu0
  %688 = vmatprep.mubr.f32.mxu0 0.0
  %689 = vmatmul.mubr.f32.gmra.mxu0 %v104
  %v690 = vpop.f32.mrf.mxu0
  %v691 = vadd.f32 0.0, %v690
  %v692 = vpop.f32.mrf.mxu0
  %693 = vmatprep.mubr.f32.mxu0 0.0
  %694 = vmatmul.mubr.f32.gmra.mxu0 %v105
  %v695 = vpop.f32.mrf.mxu0
  %v696 = vadd.f32 0.0, %v695
  %v697 = vpop.f32.mrf.mxu0
  %698 = vmatprep.mubr.f32.mxu0 0.0
  %699 = vmatmul.mubr.f32.gmra.mxu0 %v106
  %v700 = vpop.f32.mrf.mxu0
  %v701 = vadd.f32 0.0, %v700
  %v702 = vpop.f32.mrf.mxu0
  %703 = vmatprep.mubr.f32.mxu0 0.0
  %704 = vmatmul.mubr.f32.gmra.mxu0 %v107
  %v705 = vpop.f32.mrf.mxu0
  %v706 = vadd.f32 0.0, %v705
  %v707 = vpop.f32.mrf.mxu0
  %708 = vmatprep.mubr.f32.mxu0 0.0
  %709 = vmatmul.mubr.f32.gmra.mxu0 %v108
  %v710 = vpop.f32.mrf.mxu0
  %v711 = vadd.f32 0.0, %v710
  %v712 = vpop.f32.mrf.mxu0
  %713 = vmatprep.mubr.f32.mxu0 0.0
  %714 = vmatmul.mubr.f32.gmra.mxu0 %v109
  %v715 = vpop.f32.mrf.mxu0
  %v716 = vadd.f32 0.0, %v715
  %v717 = vpop.f32.mrf.mxu0
  %718 = vmatprep.mubr.f32.mxu0 0.0
  %719 = vmatmul.mubr.f32.gmra.mxu0 %v110
  %v720 = vpop.f32.mrf.mxu0
  %v721 = vadd.f32 0.0, %v720
  %v722 = vpop.f32.mrf.mxu0
  %723 = vmatprep.mubr.f32.mxu0 0.0
  %724 = vmatmul.mubr.f32.gmra.mxu0 %v111
  %v725 = vpop.f32.mrf.mxu0
  %v726 = vadd.f32 0.0, %v725
  %v727 = vpop.f32.mrf.mxu0
  %728 = vmatprep.mubr.f32.mxu0 0.0
  %729 = vmatmul.mubr.f32.gmra.mxu0 %v112
  %v730 = vpop.f32.mrf.mxu0
  %v731 = vadd.f32 0.0, %v730
  %v732 = vpop.f32.mrf.mxu0
  %733 = vmatprep.mubr.f32.mxu0 0.0
  %734 = vmatmul.mubr.f32.gmra.mxu0 %v113
  %v735 = vpop.f32.mrf.mxu0
  %v736 = vadd.f32 0.0, %v735
  %v737 = vpop.f32.mrf.mxu0
  %738 = vmatprep.mubr.f32.mxu0 0.0
  %739 = vmatmul.mubr.f32.gmra.mxu0 %v114
  %v740 = vpop.f32.mrf.mxu0
  %v741 = vadd.f32 0.0, %v740
  %v742 = vpop.f32.mrf.mxu0
  %743 = vmatprep.mubr.f32.mxu0 0.0
  %744 = vmatmul.mubr.f32.gmra.mxu0 %v115
  %v745 = vpop.f32.mrf.mxu0
  %v746 = vadd.f32 0.0, %v745
  %v747 = vpop.f32.mrf.mxu0
  %748 = vmatprep.mubr.f32.mxu0 0.0
  %749 = vmatmul.mubr.f32.gmra.mxu0 %v116
  %v750 = vpop.f32.mrf.mxu0
  %v751 = vadd.f32 0.0, %v750
  %v752 = vpop.f32.mrf.mxu0
  %753 = vmatprep.mubr.f32.mxu0 0.0
  %754 = vmatmul.mubr.f32.gmra.mxu0 %v117
  %v755 = vpop.f32.mrf.mxu0
  %v756 = vadd.f32 0.0, %v755
  %v757 = vpop.f32.mrf.mxu0
  %758 = vmatprep.mubr.f32.mxu0 0.0
  %759 = vmatmul.mubr.f32.gmra.mxu0 %v118
  %v760 = vpop.f32.mrf.mxu0
  %v761 = vadd.f32 0.0, %v760
  %v762 = vpop.f32.mrf.mxu0
  %763 = vmatprep.mubr.f32.mxu0 0.0
  %764 = vmatmul.mubr.f32.gmra.mxu0 %v119
  %v765 = vpop.f32.mrf.mxu0
  %v766 = vadd.f32 0.0, %v765
  %v767 = vpop.f32.mrf.mxu0
  %768 = vmatprep.mubr.f32.mxu0 0.0
  %769 = vmatmul.mubr.f32.gmra.mxu0 %v120
  %v770 = vpop.f32.mrf.mxu0
  %v771 = vadd.f32 0.0, %v770
  %v772 = vpop.f32.mrf.mxu0
  %773 = vmatprep.mubr.f32.mxu0 0.0
  %774 = vmatmul.mubr.f32.gmra.mxu0 %v121
  %v775 = vpop.f32.mrf.mxu0
  %v776 = vadd.f32 0.0, %v775
  %v777 = vpop.f32.mrf.mxu0
  %778 = vmatprep.mubr.f32.mxu0 0.0
  %779 = vmatmul.mubr.f32.gmra.mxu0 %v122
  %v780 = vpop.f32.mrf.mxu0
  %v781 = vadd.f32 0.0, %v780
  %v782 = vpop.f32.mrf.mxu0
  %783 = vmatprep.mubr.f32.mxu0 0.0
  %784 = vmatmul.mubr.f32.gmra.mxu0 %v123
  %v785 = vpop.f32.mrf.mxu0
  %v786 = vadd.f32 0.0, %v785
  %v787 = vpop.f32.mrf.mxu0
  %788 = vmatprep.mubr.f32.mxu0 0.0
  %789 = vmatmul.mubr.f32.gmra.mxu0 %v124
  %v790 = vpop.f32.mrf.mxu0
  %v791 = vadd.f32 0.0, %v790
  %v792 = vpop.f32.mrf.mxu0
  %793 = vmatprep.mubr.f32.mxu0 0.0
  %794 = vmatmul.mubr.f32.gmra.mxu0 %v125
  %v795 = vpop.f32.mrf.mxu0
  %v796 = vadd.f32 0.0, %v795
  %v797 = vpop.f32.mrf.mxu0
  %798 = vmatprep.mubr.f32.mxu0 0.0
  %799 = vmatmul.mubr.f32.gmra.mxu0 %v126
  %v800 = vpop.f32.mrf.mxu0
  %v801 = vadd.f32 0.0, %v800
  %v802 = vpop.f32.mrf.mxu0
  %803 = vmatprep.mubr.f32.mxu0 0.0
  %804 = vmatmul.mubr.f32.gmra.mxu0 %v127
  %v805 = vpop.f32.mrf.mxu0
  %v806 = vadd.f32 0.0, %v805
  %v807 = vpop.f32.mrf.mxu0
  %808 = vmatprep.mubr.f32.mxu0 0.0
  %809 = vmatmul.mubr.f32.gmra.mxu0 %v128
  %v810 = vpop.f32.mrf.mxu0
  %v811 = vadd.f32 0.0, %v810
  %v812 = vpop.f32.mrf.mxu0
  %813 = vmatprep.mubr.f32.mxu0 0.0
  %814 = vmatmul.mubr.f32.gmra.mxu0 %v129
  %v815 = vpop.f32.mrf.mxu0
  %v816 = vadd.f32 0.0, %v815
  %v817 = vpop.f32.mrf.mxu0
  %818 = vmatprep.mubr.f32.mxu0 0.0
  %819 = vmatmul.mubr.f32.gmra.mxu0 %v130
  %v820 = vpop.f32.mrf.mxu0
  %v821 = vadd.f32 0.0, %v820
  %v822 = vpop.f32.mrf.mxu0
  %823 = vmatprep.mubr.f32.mxu0 0.0
  %824 = vmatmul.mubr.f32.gmra.mxu0 %v131
  %v825 = vpop.f32.mrf.mxu0
  %v826 = vadd.f32 0.0, %v825
  %v827 = vpop.f32.mrf.mxu0
  %828 = vmatprep.mubr.f32.mxu0 0.0
  %829 = vmatmul.mubr.f32.gmra.mxu0 %v132
  %v830 = vpop.f32.mrf.mxu0
  %v831 = vadd.f32 0.0, %v830
  %v832 = vpop.f32.mrf.mxu0
  %833 = vmatprep.mubr.f32.mxu0 0.0
  %834 = vmatmul.mubr.f32.gmra.mxu0 %v133
  %v835 = vpop.f32.mrf.mxu0
  %v836 = vadd.f32 0.0, %v835
  %v837 = vpop.f32.mrf.mxu0
  %838 = vmatprep.mubr.f32.mxu0 0.0
  %839 = vmatmul.mubr.f32.gmra.mxu0 %v134
  %v840 = vpop.f32.mrf.mxu0
  %v841 = vadd.f32 0.0, %v840
  %v842 = vpop.f32.mrf.mxu0
  %843 = vmatprep.mubr.f32.mxu0 0.0
  %844 = vmatmul.mubr.f32.gmra.mxu0 %v135
  %v845 = vpop.f32.mrf.mxu0
  %v846 = vadd.f32 0.0, %v845
  %v847 = vpop.f32.mrf.mxu0
  %848 = vmatprep.mubr.f32.mxu0 0.0
  %849 = vmatmul.mubr.f32.gmra.mxu0 %v136
  %v850 = vpop.f32.mrf.mxu0
  %v851 = vadd.f32 0.0, %v850
  %v852 = vpop.f32.mrf.mxu0
  %853 = vmatprep.mubr.f32.mxu0 0.0
  %854 = vmatmul.mubr.f32.gmra.mxu0 %v137
  %v855 = vpop.f32.mrf.mxu0
  %v856 = vadd.f32 0.0, %v855
  %v857 = vpop.f32.mrf.mxu0
  %858 = vmatprep.mubr.f32.mxu0 0.0
  %859 = vmatmul.mubr.f32.gmra.mxu0 %v138
  %v860 = vpop.f32.mrf.mxu0
  %v861 = vadd.f32 0.0, %v860
  %v862 = vpop.f32.mrf.mxu0
  %863 = vmatprep.mubr.f32.mxu0 0.0
  %864 = vmatmul.mubr.f32.gmra.mxu0 %v139
  %v865 = vpop.f32.mrf.mxu0
  %v866 = vadd.f32 0.0, %v865
  %v867 = vpop.f32.mrf.mxu0
  %868 = vmatprep.mubr.f32.mxu0 0.0
  %869 = vmatmul.mubr.f32.gmra.mxu0 %v140
  %v870 = vpop.f32.mrf.mxu0
  %v871 = vadd.f32 0.0, %v870
  %v872 = vpop.f32.mrf.mxu0
  %873 = vmatprep.mubr.f32.mxu0 0.0
  %874 = vmatmul.mubr.f32.gmra.mxu0 %v141
  %v875 = vpop.f32.mrf.mxu0
  %v876 = vadd.f32 0.0, %v875
  %v877 = vpop.f32.mrf.mxu0
  %878 = vmatprep.mubr.f32.mxu0 0.0
  %879 = vmatmul.mubr.f32.gmra.mxu0 %v142
  %v880 = vpop.f32.mrf.mxu0
  %v881 = vadd.f32 0.0, %v880
  %v882 = vpop.f32.mrf.mxu0
  %883 = vmatprep.mubr.f32.mxu0 0.0
  %884 = vmatmul.mubr.f32.gmra.mxu0 %v143
  %v885 = vpop.f32.mrf.mxu0
  %v886 = vadd.f32 0.0, %v885
  %v887 = vpop.f32.mrf.mxu0
  %888 = vmatprep.mubr.f32.mxu0 0.0
  %889 = vmatmul.mubr.f32.gmra.mxu0 %v144
  %v890 = vpop.f32.mrf.mxu0
  %v891 = vadd.f32 0.0, %v890
  %v892 = vpop.f32.mrf.mxu0
  %893 = vmatprep.mubr.f32.mxu0 0.0
  %894 = vmatmul.mubr.f32.gmra.mxu0 %v145
  %v895 = vpop.f32.mrf.mxu0
  %v896 = vadd.f32 0.0, %v895
  %v897 = vpop.f32.mrf.mxu0
  %898 = vmatprep.mubr.f32.mxu0 0.0
  %899 = vmatmul.mubr.f32.gmra.mxu0 %v146
  %v900 = vpop.f32.mrf.mxu0
  %v901 = vadd.f32 0.0, %v900
  %v902 = vpop.f32.mrf.mxu0
  %903 = vmatprep.mubr.f32.mxu0 0.0
  %904 = vmatmul.mubr.f32.gmra.mxu0 %v147
  %v905 = vpop.f32.mrf.mxu0
  %v906 = vadd.f32 0.0, %v905
  %v907 = vpop.f32.mrf.mxu0
  %908 = vmatprep.mubr.f32.mxu0 0.0
  %909 = vmatmul.mubr.f32.gmra.mxu0 %v148
  %v910 = vpop.f32.mrf.mxu0
  %v911 = vadd.f32 0.0, %v910
  %v912 = vpop.f32.mrf.mxu0
  %913 = vmatprep.mubr.f32.mxu0 0.0
  %914 = vmatmul.mubr.f32.gmra.mxu0 %v149
  %v915 = vpop.f32.mrf.mxu0
  %v916 = vadd.f32 0.0, %v915
  %v917 = vpop.f32.mrf.mxu0
  %918 = vmatprep.mubr.f32.mxu0 0.0
  %919 = vmatmul.mubr.f32.gmra.mxu0 %v150
  %v920 = vpop.f32.mrf.mxu0
  %v921 = vadd.f32 0.0, %v920
  %v922 = vpop.f32.mrf.mxu0
  %923 = vmatprep.mubr.f32.mxu0 0.0
  %924 = vmatmul.mubr.f32.gmra.mxu0 %v151
  %v925 = vpop.f32.mrf.mxu0
  %v926 = vadd.f32 0.0, %v925
  %v927 = vpop.f32.mrf.mxu0
  %928 = vmatprep.mubr.f32.mxu0 0.0
  %929 = vmatmul.mubr.f32.gmra.mxu0 %v152
  %v930 = vpop.f32.mrf.mxu0
  %v931 = vadd.f32 0.0, %v930
  %v932 = vpop.f32.mrf.mxu0
  %933 = vmatprep.mubr.f32.mxu0 0.0
  %934 = vmatmul.mubr.f32.gmra.mxu0 %v153
  %v935 = vpop.f32.mrf.mxu0
  %v936 = vadd.f32 0.0, %v935
  %v937 = vpop.f32.mrf.mxu0
  %938 = vmatprep.mubr.f32.mxu0 0.0
  %939 = vmatmul.mubr.f32.gmra.mxu0 %v154
  %v940 = vpop.f32.mrf.mxu0
  %v941 = vadd.f32 0.0, %v940
  %v942 = vpop.f32.mrf.mxu0
  %943 = vmatprep.mubr.f32.mxu0 0.0
  %944 = vmatmul.mubr.f32.gmra.mxu0 %v155
  %v945 = vpop.f32.mrf.mxu0
  %v946 = vadd.f32 0.0, %v945
  %v947 = vpop.f32.mrf.mxu0
  %948 = vmatprep.mubr.f32.mxu0 0.0
  %949 = vmatmul.mubr.f32.gmra.mxu0 %v156
  %v950 = vpop.f32.mrf.mxu0
  %v951 = vadd.f32 0.0, %v950
  %v952 = vpop.f32.mrf.mxu0
  %953 = vmatprep.mubr.f32.mxu0 0.0
  %954 = vmatmul.mubr.f32.gmra.mxu0 %v157
  %v955 = vpop.f32.mrf.mxu0
  %v956 = vadd.f32 0.0, %v955
  %v957 = vpop.f32.mrf.mxu0
  %958 = vdwg.mxu0
  %v959 = vmax.f32 %v241, %v421
  %v960 = vmax.f32 %v959, %v601
  %v961 = vmax.f32 %v960, %v781
  %v962 = vmax.f32 %v246, %v426
  %v963 = vmax.f32 %v962, %v606
  %v964 = vmax.f32 %v963, %v786
  %v965 = vmax.f32 %v251, %v431
  %v966 = vmax.f32 %v965, %v611
  %v967 = vmax.f32 %v966, %v791
  %v968 = vmax.f32 %v256, %v436
  %v969 = vmax.f32 %v968, %v616
  %v970 = vmax.f32 %v969, %v796
  %v971 = vmax.f32 %v261, %v441
  %v972 = vmax.f32 %v971, %v621
  %v973 = vmax.f32 %v972, %v801
  %v974 = vmax.f32 %v266, %v446
  %v975 = vmax.f32 %v974, %v626
  %v976 = vmax.f32 %v975, %v806
  %v977 = vmax.f32 %v271, %v451
  %v978 = vmax.f32 %v977, %v631
  %v979 = vmax.f32 %v978, %v811
  %v980 = vmax.f32 %v276, %v456
  %v981 = vmax.f32 %v980, %v636
  %v982 = vmax.f32 %v981, %v816
  %v983 = vmax.f32 %v281, %v461
  %v984 = vmax.f32 %v983, %v641
  %v985 = vmax.f32 %v984, %v821
  %v986 = vmax.f32 %v286, %v466
  %v987 = vmax.f32 %v986, %v646
  %v988 = vmax.f32 %v987, %v826
  %v989 = vmax.f32 %v291, %v471
  %v990 = vmax.f32 %v989, %v651
  %v991 = vmax.f32 %v990, %v831
  %v992 = vmax.f32 %v296, %v476
  %v993 = vmax.f32 %v992, %v656
  %v994 = vmax.f32 %v993, %v836
  %v995 = vmax.f32 %v301, %v481
  %v996 = vmax.f32 %v995, %v661
  %v997 = vmax.f32 %v996, %v841
  %v998 = vmax.f32 %v306, %v486
  %v999 = vmax.f32 %v998, %v666
  %v1000 = vmax.f32 %v999, %v846
  %v1001 = vmax.f32 %v311, %v491
  %v1002 = vmax.f32 %v1001, %v671
  %v1003 = vmax.f32 %v1002, %v851
  %v1004 = vmax.f32 %v316, %v496
  %v1005 = vmax.f32 %v1004, %v676
  %v1006 = vmax.f32 %v1005, %v856
  %v1007 = vmax.f32 %v321, %v501
  %v1008 = vmax.f32 %v1007, %v681
  %v1009 = vmax.f32 %v1008, %v861
  %v1010 = vmax.f32 %v326, %v506
  %v1011 = vmax.f32 %v1010, %v686
  %v1012 = vmax.f32 %v1011, %v866
  %v1013 = vmax.f32 %v331, %v511
  %v1014 = vmax.f32 %v1013, %v691
  %v1015 = vmax.f32 %v1014, %v871
  %v1016 = vmax.f32 %v336, %v516
  %v1017 = vmax.f32 %v1016, %v696
  %v1018 = vmax.f32 %v1017, %v876
  %v1019 = vmax.f32 %v341, %v521
  %v1020 = vmax.f32 %v1019, %v701
  %v1021 = vmax.f32 %v1020, %v881
  %v1022 = vmax.f32 %v346, %v526
  %v1023 = vmax.f32 %v1022, %v706
  %v1024 = vmax.f32 %v1023, %v886
  %v1025 = vmax.f32 %v351, %v531
  %v1026 = vmax.f32 %v1025, %v711
  %v1027 = vmax.f32 %v1026, %v891
  %v1028 = vmax.f32 %v356, %v536
  %v1029 = vmax.f32 %v1028, %v716
  %v1030 = vmax.f32 %v1029, %v896
  %v1031 = vmax.f32 %v361, %v541
  %v1032 = vmax.f32 %v1031, %v721
  %v1033 = vmax.f32 %v1032, %v901
  %v1034 = vmax.f32 %v366, %v546
  %v1035 = vmax.f32 %v1034, %v726
  %v1036 = vmax.f32 %v1035, %v906
  %v1037 = vmax.f32 %v371, %v551
  %v1038 = vmax.f32 %v1037, %v731
  %v1039 = vmax.f32 %v1038, %v911
  %v1040 = vmax.f32 %v376, %v556
  %v1041 = vmax.f32 %v1040, %v736
  %v1042 = vmax.f32 %v1041, %v916
  %v1043 = vmax.f32 %v381, %v561
  %v1044 = vmax.f32 %v1043, %v741
  %v1045 = vmax.f32 %v1044, %v921
  %v1046 = vmax.f32 %v386, %v566
  %v1047 = vmax.f32 %v1046, %v746
  %v1048 = vmax.f32 %v1047, %v926
  %v1049 = vmax.f32 %v391, %v571
  %v1050 = vmax.f32 %v1049, %v751
  %v1051 = vmax.f32 %v1050, %v931
  %v1052 = vmax.f32 %v396, %v576
  %v1053 = vmax.f32 %v1052, %v756
  %v1054 = vmax.f32 %v1053, %v936
  %v1055 = vmax.f32 %v401, %v581
  %v1056 = vmax.f32 %v1055, %v761
  %v1057 = vmax.f32 %v1056, %v941
  %v1058 = vmax.f32 %v406, %v586
  %v1059 = vmax.f32 %v1058, %v766
  %v1060 = vmax.f32 %v1059, %v946
  %v1061 = vmax.f32 %v411, %v591
  %v1062 = vmax.f32 %v1061, %v771
  %v1063 = vmax.f32 %v1062, %v951
  %v1064 = vmax.f32 %v416, %v596
  %v1065 = vmax.f32 %v1064, %v776
  %v1066 = vmax.f32 %v1065, %v956
  %v1067 = vld [vmem:[%s2] sm:$0x1]
  %v1069 = vlaneseq
  %v1070 = vshrl.u32 %v1069, 7
  %v1071 = vsub.s32 0, %v1070
  %v1072 = vrot.slane %v1067, %v1071
  %v1074 = vadd.f32 %v961, %v1072
  %v1075 = vadd.f32 %v964, %v1072
  %v1076 = vadd.f32 %v967, %v1072
  %v1077 = vadd.f32 %v970, %v1072
  %v1078 = vadd.f32 %v973, %v1072
  %v1079 = vadd.f32 %v976, %v1072
  %v1080 = vadd.f32 %v979, %v1072
  %v1081 = vadd.f32 %v982, %v1072
  %v1082 = vadd.f32 %v985, %v1072
  %v1083 = vadd.f32 %v988, %v1072
  %v1084 = vadd.f32 %v991, %v1072
  %v1085 = vadd.f32 %v994, %v1072
  %v1086 = vadd.f32 %v997, %v1072
  %v1087 = vadd.f32 %v1000, %v1072
  %v1088 = vadd.f32 %v1003, %v1072
  %v1089 = vadd.f32 %v1006, %v1072
  %v1090 = vadd.f32 %v1009, %v1072
  %v1091 = vadd.f32 %v1012, %v1072
  %v1092 = vadd.f32 %v1015, %v1072
  %v1093 = vadd.f32 %v1018, %v1072
  %v1094 = vadd.f32 %v1021, %v1072
  %v1095 = vadd.f32 %v1024, %v1072
  %v1096 = vadd.f32 %v1027, %v1072
  %v1097 = vadd.f32 %v1030, %v1072
  %v1098 = vadd.f32 %v1033, %v1072
  %v1099 = vadd.f32 %v1036, %v1072
  %v1100 = vadd.f32 %v1039, %v1072
  %v1101 = vadd.f32 %v1042, %v1072
  %v1102 = vadd.f32 %v1045, %v1072
  %v1103 = vadd.f32 %v1048, %v1072
  %v1104 = vadd.f32 %v1051, %v1072
  %v1105 = vadd.f32 %v1054, %v1072
  %v1106 = vadd.f32 %v1057, %v1072
  %v1107 = vadd.f32 %v1060, %v1072
  %v1108 = vadd.f32 %v1063, %v1072
  %v1109 = vadd.f32 %v1066, %v1072
  %v1110 = vmax.f32 %v1074, 0.0
  %v1111 = vmax.f32 %v1075, 0.0
  %v1112 = vmax.f32 %v1076, 0.0
  %v1113 = vmax.f32 %v1077, 0.0
  %v1114 = vmax.f32 %v1078, 0.0
  %v1115 = vmax.f32 %v1079, 0.0
  %v1116 = vmax.f32 %v1080, 0.0
  %v1117 = vmax.f32 %v1081, 0.0
  %v1118 = vmax.f32 %v1082, 0.0
  %v1119 = vmax.f32 %v1083, 0.0
  %v1120 = vmax.f32 %v1084, 0.0
  %v1121 = vmax.f32 %v1085, 0.0
  %v1122 = vmax.f32 %v1086, 0.0
  %v1123 = vmax.f32 %v1087, 0.0
  %v1124 = vmax.f32 %v1088, 0.0
  %v1125 = vmax.f32 %v1089, 0.0
  %v1126 = vmax.f32 %v1090, 0.0
  %v1127 = vmax.f32 %v1091, 0.0
  %v1128 = vmax.f32 %v1092, 0.0
  %v1129 = vmax.f32 %v1093, 0.0
  %v1130 = vmax.f32 %v1094, 0.0
  %v1131 = vmax.f32 %v1095, 0.0
  %v1132 = vmax.f32 %v1096, 0.0
  %v1133 = vmax.f32 %v1097, 0.0
  %v1134 = vmax.f32 %v1098, 0.0
  %v1135 = vmax.f32 %v1099, 0.0
  %v1136 = vmax.f32 %v1100, 0.0
  %v1137 = vmax.f32 %v1101, 0.0
  %v1138 = vmax.f32 %v1102, 0.0
  %v1139 = vmax.f32 %v1103, 0.0
  %v1140 = vmax.f32 %v1104, 0.0
  %v1141 = vmax.f32 %v1105, 0.0
  %v1142 = vmax.f32 %v1106, 0.0
  %v1143 = vmax.f32 %v1107, 0.0
  %v1144 = vmax.f32 %v1108, 0.0
  %v1145 = vmax.f32 %v1109, 0.0
  %1146 = vst [vmem:[%s3] sm:$0xff] %v1110
  %1147 = vst [vmem:[%s3 + $0x8] sm:$0xff] %v1111
  %1148 = vst [vmem:[%s3 + $0x10] sm:$0xff] %v1112
  %1149 = vst [vmem:[%s3 + $0x18] sm:$0xff] %v1113
  %1150 = vst [vmem:[%s3 + $0x20] sm:$0xff] %v1114
  %1151 = vst [vmem:[%s3 + $0x28] sm:$0xff] %v1115
  %1152 = vst [vmem:[%s3 + $0x30] sm:$0xff] %v1116
  %1153 = vst [vmem:[%s3 + $0x38] sm:$0xff] %v1117
  %1154 = vst [vmem:[%s3 + $0x40] sm:$0xff] %v1118
  %1155 = vst [vmem:[%s3 + $0x48] sm:$0xff] %v1119
  %1156 = vst [vmem:[%s3 + $0x50] sm:$0xff] %v1120
  %1157 = vst [vmem:[%s3 + $0x58] sm:$0xff] %v1121
  %1158 = vst [vmem:[%s3 + $0x60] sm:$0xff] %v1122
  %1159 = vst [vmem:[%s3 + $0x68] sm:$0xff] %v1123
  %1160 = vst [vmem:[%s3 + $0x70] sm:$0xff] %v1124
  %1161 = vst [vmem:[%s3 + $0x78] sm:$0xff] %v1125
  %1162 = vst [vmem:[%s3 + $0x80] sm:$0xff] %v1126
  %1163 = vst [vmem:[%s3 + $0x88] sm:$0xff] %v1127
  %1164 = vst [vmem:[%s3 + $0x90] sm:$0xff] %v1128
  %1165 = vst [vmem:[%s3 + $0x98] sm:$0xff] %v1129
  %1166 = vst [vmem:[%s3 + $0xa0] sm:$0xff] %v1130
  %1167 = vst [vmem:[%s3 + $0xa8] sm:$0xff] %v1131
  %1168 = vst [vmem:[%s3 + $0xb0] sm:$0xff] %v1132
  %1169 = vst [vmem:[%s3 + $0xb8] sm:$0xff] %v1133
  %1170 = vst [vmem:[%s3 + $0xc0] sm:$0xff] %v1134
  %1171 = vst [vmem:[%s3 + $0xc8] sm:$0xff] %v1135
  %1172 = vst [vmem:[%s3 + $0xd0] sm:$0xff] %v1136
  %1173 = vst [vmem:[%s3 + $0xd8] sm:$0xff] %v1137
  %1174 = vst [vmem:[%s3 + $0xe0] sm:$0xff] %v1138
  %1175 = vst [vmem:[%s3 + $0xe8] sm:$0xff] %v1139
  %1176 = vst [vmem:[%s3 + $0xf0] sm:$0xff] %v1140
  %1177 = vst [vmem:[%s3 + $0xf8] sm:$0xff] %v1141
  %1178 = vst [vmem:[%s3 + $0x100] sm:$0xff] %v1142
  %1179 = vst [vmem:[%s3 + $0x108] sm:$0xff] %v1143
  %1180 = vst [vmem:[%s3 + $0x110] sm:$0xff] %v1144
  %1181 = vst [vmem:[%s3 + $0x118] sm:$0xff] %v1145
  // Predicated region
  $region14: #{model_forward.3} parent=0 // pred_check
    _
  $region15: #{model_forward.3} parent=0 // pred_check_branch
    %1183 = sbr.rel (0) target = $region17
  $region16: #{model_forward.3} parent=0 // pred_region
    _
  $region17: #{model_forward.3} parent=0 // pred_fallthru
    _
  // Predicated region
  $region18: #{model_forward.3} parent=0 // pred_check
    _
  $region19: #{model_forward.3} parent=0 // pred_check_branch
    %1185 = sbr.rel (0) target = $region21
  $region20: #{model_forward.3} parent=0 // pred_region
    _
  $region21: #{model_forward.3} parent=0 // pred_fallthru
    _

// kernel: model_forward.4
$region0: #{model_forward.4}
  #allocation0 [shape = 'u32[]', space=smem, size = 0x4, offset = 0x4, fixed_abs, tag = 'smem constant byte address 0x4 - core index']
  #allocation1 [shape = 'u32[144,128]{1,0:T(1,128)}', space=vmem, size = 0x12000, scoped, tag = 'internal scratch']
  %s0 = inlined_call_operand.vmem [shape: f32[4,32,256], index: 0, kind: input, shape index: {}]
  %s1 = inlined_call_operand.vmem [shape: f32[256,128], index: 1, kind: input, shape index: {}]
  %s2 = inlined_call_operand.vmem [shape: f32[1,128], index: 2, kind: input, shape index: {}]
  %s3 = inlined_call_operand.vmem [shape: f32[32,128], index: 3, kind: output, shape index: {}]
  %s4 = sld [smem:[#allocation0]]
  $region22: #{model_forward.4} parent=0
    _
  %s6 = ssub.s32 1, %s4
  %s7 = scalar_select 0, %s6, %s4
  // Predicated region
  $region2: #{model_forward.4} parent=0 // pred_check
    _
  $region3: #{model_forward.4} parent=0 // pred_check_branch
    %9 = sbr.rel (0) target = $region5
  $region4: #{model_forward.4} parent=0 // pred_region
    _
  $region5: #{model_forward.4} parent=0 // pred_fallthru
    _
  // Predicated region
  $region6: #{model_forward.4} parent=0 // pred_check
    _
  $region7: #{model_forward.4} parent=0 // pred_check_branch
    %11 = sbr.rel (0) target = $region9
  $region8: #{model_forward.4} parent=0 // pred_region
    _
  $region9: #{model_forward.4} parent=0 // pred_fallthru
    _
  // Predicated region
  $region10: #{model_forward.4} parent=0 // pred_check
    _
  $region11: #{model_forward.4} parent=0 // pred_check_branch
    %13 = sbr.rel (0) target = $region13
  $region12: #{model_forward.4} parent=0 // pred_region
    _
  $region13: #{model_forward.4} parent=0 // pred_fallthru
    _
  %v14 = vld [vmem:[%s0] sm:$0xff]
  %v15 = vld [vmem:[%s0 + $0x8] sm:$0xff]
  %v16 = vld [vmem:[%s0 + $0x10] sm:$0xff]
  %v17 = vld [vmem:[%s0 + $0x18] sm:$0xff]
  %v18 = vld [vmem:[%s0 + $0x20] sm:$0xff]
  %v19 = vld [vmem:[%s0 + $0x28] sm:$0xff]
  %v20 = vld [vmem:[%s0 + $0x30] sm:$0xff]
  %v21 = vld [vmem:[%s0 + $0x38] sm:$0xff]
  %v22 = vld [vmem:[%s0 + $0x40] sm:$0xff]
  %v23 = vld [vmem:[%s0 + $0x48] sm:$0xff]
  %v24 = vld [vmem:[%s0 + $0x50] sm:$0xff]
  %v25 = vld [vmem:[%s0 + $0x58] sm:$0xff]
  %v26 = vld [vmem:[%s0 + $0x60] sm:$0xff]
  %v27 = vld [vmem:[%s0 + $0x68] sm:$0xff]
  %v28 = vld [vmem:[%s0 + $0x70] sm:$0xff]
  %v29 = vld [vmem:[%s0 + $0x78] sm:$0xff]
  %v30 = vld [vmem:[%s0 + $0x80] sm:$0xff]
  %v31 = vld [vmem:[%s0 + $0x88] sm:$0xff]
  %v32 = vld [vmem:[%s0 + $0x90] sm:$0xff]
  %v33 = vld [vmem:[%s0 + $0x98] sm:$0xff]
  %v34 = vld [vmem:[%s0 + $0xa0] sm:$0xff]
  %v35 = vld [vmem:[%s0 + $0xa8] sm:$0xff]
  %v36 = vld [vmem:[%s0 + $0xb0] sm:$0xff]
  %v37 = vld [vmem:[%s0 + $0xb8] sm:$0xff]
  %v38 = vld [vmem:[%s0 + $0xc0] sm:$0xff]
  %v39 = vld [vmem:[%s0 + $0xc8] sm:$0xff]
  %v40 = vld [vmem:[%s0 + $0xd0] sm:$0xff]
  %v41 = vld [vmem:[%s0 + $0xd8] sm:$0xff]
  %v42 = vld [vmem:[%s0 + $0xe0] sm:$0xff]
  %v43 = vld [vmem:[%s0 + $0xe8] sm:$0xff]
  %v44 = vld [vmem:[%s0 + $0xf0] sm:$0xff]
  %v45 = vld [vmem:[%s0 + $0xf8] sm:$0xff]
  %v46 = vld [vmem:[%s1] sm:$0xff]
  %v47 = vld [vmem:[%s1 + $0x8] sm:$0xff]
  %v48 = vld [vmem:[%s1 + $0x10] sm:$0xff]
  %v49 = vld [vmem:[%s1 + $0x18] sm:$0xff]
  %v50 = vld [vmem:[%s1 + $0x20] sm:$0xff]
  %v51 = vld [vmem:[%s1 + $0x28] sm:$0xff]
  %v52 = vld [vmem:[%s1 + $0x30] sm:$0xff]
  %v53 = vld [vmem:[%s1 + $0x38] sm:$0xff]
  %v54 = vld [vmem:[%s1 + $0x40] sm:$0xff]
  %v55 = vld [vmem:[%s1 + $0x48] sm:$0xff]
  %v56 = vld [vmem:[%s1 + $0x50] sm:$0xff]
  %v57 = vld [vmem:[%s1 + $0x58] sm:$0xff]
  %v58 = vld [vmem:[%s1 + $0x60] sm:$0xff]
  %v59 = vld [vmem:[%s1 + $0x68] sm:$0xff]
  %v60 = vld [vmem:[%s1 + $0x70] sm:$0xff]
  %v61 = vld [vmem:[%s1 + $0x78] sm:$0xff]
  %v62 = vld [vmem:[%s1 + $0x80] sm:$0xff]
  %v63 = vld [vmem:[%s1 + $0x88] sm:$0xff]
  %v64 = vld [vmem:[%s1 + $0x90] sm:$0xff]
  %v65 = vld [vmem:[%s1 + $0x98] sm:$0xff]
  %v66 = vld [vmem:[%s1 + $0xa0] sm:$0xff]
  %v67 = vld [vmem:[%s1 + $0xa8] sm:$0xff]
  %v68 = vld [vmem:[%s1 + $0xb0] sm:$0xff]
  %v69 = vld [vmem:[%s1 + $0xb8] sm:$0xff]
  %v70 = vld [vmem:[%s1 + $0xc0] sm:$0xff]
  %v71 = vld [vmem:[%s1 + $0xc8] sm:$0xff]
  %v72 = vld [vmem:[%s1 + $0xd0] sm:$0xff]
  %v73 = vld [vmem:[%s1 + $0xd8] sm:$0xff]
  %v74 = vld [vmem:[%s1 + $0xe0] sm:$0xff]
  %v75 = vld [vmem:[%s1 + $0xe8] sm:$0xff]
  %v76 = vld [vmem:[%s1 + $0xf0] sm:$0xff]
  %v77 = vld [vmem:[%s1 + $0xf8] sm:$0xff]
  %78 = vmatprep.subr.mxu0 0.0
  %79 = vmatpush1.msra.mxu0 %v61
  %80 = vmatprep.subr.mxu0 0.0
  %81 = vmatpush1.msra.mxu0 %v60
  %82 = vmatprep.subr.mxu0 0.0
  %83 = vmatpush1.msra.mxu0 %v59
  %84 = vmatprep.subr.mxu0 0.0
  %85 = vmatpush1.msra.mxu0 %v58
  %86 = vmatprep.subr.mxu0 0.0
  %87 = vmatpush1.msra.mxu0 %v57
  %88 = vmatprep.subr.mxu0 0.0
  %89 = vmatpush1.msra.mxu0 %v56
  %90 = vmatprep.subr.mxu0 0.0
  %91 = vmatpush1.msra.mxu0 %v55
  %92 = vmatprep.subr.mxu0 0.0
  %93 = vmatpush1.msra.mxu0 %v54
  %94 = vmatprep.subr.mxu0 0.0
  %95 = vmatpush1.msra.mxu0 %v53
  %96 = vmatprep.subr.mxu0 0.0
  %97 = vmatpush1.msra.mxu0 %v52
  %98 = vmatprep.subr.mxu0 0.0
  %99 = vmatpush1.msra.mxu0 %v51
  %100 = vmatprep.subr.mxu0 0.0
  %101 = vmatpush1.msra.mxu0 %v50
  %102 = vmatprep.subr.mxu0 0.0
  %103 = vmatpush1.msra.mxu0 %v49
  %104 = vmatprep.subr.mxu0 0.0
  %105 = vmatpush1.msra.mxu0 %v48
  %106 = vmatprep.subr.mxu0 0.0
  %107 = vmatpush1.msra.mxu0 %v47
  %108 = vmatprep.subr.mxu0 0.0
  %109 = vmatpush1.msra.mxu0 %v46
  %110 = vmatprep.subr.mxu0 0.0
  %111 = vmatpush2.msra.mxu0 %v77
  %112 = vmatprep.subr.mxu0 0.0
  %113 = vmatpush2.msra.mxu0 %v76
  %114 = vmatprep.subr.mxu0 0.0
  %115 = vmatpush2.msra.mxu0 %v75
  %116 = vmatprep.subr.mxu0 0.0
  %117 = vmatpush2.msra.mxu0 %v74
  %118 = vmatprep.subr.mxu0 0.0
  %119 = vmatpush2.msra.mxu0 %v73
  %120 = vmatprep.subr.mxu0 0.0
  %121 = vmatpush2.msra.mxu0 %v72
  %122 = vmatprep.subr.mxu0 0.0
  %123 = vmatpush2.msra.mxu0 %v71
  %124 = vmatprep.subr.mxu0 0.0
  %125 = vmatpush2.msra.mxu0 %v70
  %126 = vmatprep.subr.mxu0 0.0
  %127 = vmatpush2.msra.mxu0 %v69
  %128 = vmatprep.subr.mxu0 0.0
  %129 = vmatpush2.msra.mxu0 %v68
  %130 = vmatprep.subr.mxu0 0.0
  %131 = vmatpush2.msra.mxu0 %v67
  %132 = vmatprep.subr.mxu0 0.0
  %133 = vmatpush2.msra.mxu0 %v66
  %134 = vmatprep.subr.mxu0 0.0
  %135 = vmatpush2.msra.mxu0 %v65
  %136 = vmatprep.subr.mxu0 0.0
  %137 = vmatpush2.msra.mxu0 %v64
  %138 = vmatprep.subr.mxu0 0.0
  %139 = vmatpush2.msra.mxu0 %v63
  %140 = vmatprep.subr.mxu0 0.0
  %141 = vmatpush2.msra.mxu0 %v62
  %142 = vmatprep.mubr.f32.mxu0 %v15
  %143 = vmatmul.mubr.f32.gmra.mxu0 %v14
  %v144 = vpop.f32.mrf.mxu0
  %v145 = vadd.f32 0.0, %v144
  %v146 = vpop.f32.mrf.mxu0
  %147 = vmatprep.mubr.f32.mxu0 %v17
  %148 = vmatmul.mubr.f32.gmra.mxu0 %v16
  %v149 = vpop.f32.mrf.mxu0
  %v150 = vadd.f32 0.0, %v149
  %v151 = vpop.f32.mrf.mxu0
  %152 = vmatprep.mubr.f32.mxu0 %v19
  %153 = vmatmul.mubr.f32.gmra.mxu0 %v18
  %v154 = vpop.f32.mrf.mxu0
  %v155 = vadd.f32 0.0, %v154
  %v156 = vpop.f32.mrf.mxu0
  %157 = vmatprep.mubr.f32.mxu0 %v21
  %158 = vmatmul.mubr.f32.gmra.mxu0 %v20
  %v159 = vpop.f32.mrf.mxu0
  %v160 = vadd.f32 0.0, %v159
  %v161 = vpop.f32.mrf.mxu0
  %162 = vmatprep.mubr.f32.mxu0 %v23
  %163 = vmatmul.mubr.f32.gmra.mxu0 %v22
  %v164 = vpop.f32.mrf.mxu0
  %v165 = vadd.f32 0.0, %v164
  %v166 = vpop.f32.mrf.mxu0
  %167 = vmatprep.mubr.f32.mxu0 %v25
  %168 = vmatmul.mubr.f32.gmra.mxu0 %v24
  %v169 = vpop.f32.mrf.mxu0
  %v170 = vadd.f32 0.0, %v169
  %v171 = vpop.f32.mrf.mxu0
  %172 = vmatprep.mubr.f32.mxu0 %v27
  %173 = vmatmul.mubr.f32.gmra.mxu0 %v26
  %v174 = vpop.f32.mrf.mxu0
  %v175 = vadd.f32 0.0, %v174
  %v176 = vpop.f32.mrf.mxu0
  %177 = vmatprep.mubr.f32.mxu0 %v29
  %178 = vmatmul.mubr.f32.gmra.mxu0 %v28
  %v179 = vpop.f32.mrf.mxu0
  %v180 = vadd.f32 0.0, %v179
  %v181 = vpop.f32.mrf.mxu0
  %182 = vmatprep.mubr.f32.mxu0 %v31
  %183 = vmatmul.mubr.f32.gmra.mxu0 %v30
  %v184 = vpop.f32.mrf.mxu0
  %v185 = vadd.f32 0.0, %v184
  %v186 = vpop.f32.mrf.mxu0
  %187 = vmatprep.mubr.f32.mxu0 %v33
  %188 = vmatmul.mubr.f32.gmra.mxu0 %v32
  %v189 = vpop.f32.mrf.mxu0
  %v190 = vadd.f32 0.0, %v189
  %v191 = vpop.f32.mrf.mxu0
  %192 = vmatprep.mubr.f32.mxu0 %v35
  %193 = vmatmul.mubr.f32.gmra.mxu0 %v34
  %v194 = vpop.f32.mrf.mxu0
  %v195 = vadd.f32 0.0, %v194
  %v196 = vpop.f32.mrf.mxu0
  %197 = vmatprep.mubr.f32.mxu0 %v37
  %198 = vmatmul.mubr.f32.gmra.mxu0 %v36
  %v199 = vpop.f32.mrf.mxu0
  %v200 = vadd.f32 0.0, %v199
  %v201 = vpop.f32.mrf.mxu0
  %202 = vmatprep.mubr.f32.mxu0 %v39
  %203 = vmatmul.mubr.f32.gmra.mxu0 %v38
  %v204 = vpop.f32.mrf.mxu0
  %v205 = vadd.f32 0.0, %v204
  %v206 = vpop.f32.mrf.mxu0
  %207 = vmatprep.mubr.f32.mxu0 %v41
  %208 = vmatmul.mubr.f32.gmra.mxu0 %v40
  %v209 = vpop.f32.mrf.mxu0
  %v210 = vadd.f32 0.0, %v209
  %v211 = vpop.f32.mrf.mxu0
  %212 = vmatprep.mubr.f32.mxu0 %v43
  %213 = vmatmul.mubr.f32.gmra.mxu0 %v42
  %v214 = vpop.f32.mrf.mxu0
  %v215 = vadd.f32 0.0, %v214
  %v216 = vpop.f32.mrf.mxu0
  %217 = vmatprep.mubr.f32.mxu0 %v45
  %218 = vmatmul.mubr.f32.gmra.mxu0 %v44
  %v219 = vpop.f32.mrf.mxu0
  %v220 = vadd.f32 0.0, %v219
  %v221 = vpop.f32.mrf.mxu0
  %222 = vdwg.mxu0
  %v223 = vmax.f32 %v145, %v165
  %v224 = vmax.f32 %v223, %v185
  %v225 = vmax.f32 %v224, %v205
  %v226 = vmax.f32 %v150, %v170
  %v227 = vmax.f32 %v226, %v190
  %v228 = vmax.f32 %v227, %v210
  %v229 = vmax.f32 %v155, %v175
  %v230 = vmax.f32 %v229, %v195
  %v231 = vmax.f32 %v230, %v215
  %v232 = vmax.f32 %v160, %v180
  %v233 = vmax.f32 %v232, %v200
  %v234 = vmax.f32 %v233, %v220
  %v235 = vld [vmem:[%s2] sm:$0x1]
  %v237 = vlaneseq
  %v238 = vshrl.u32 %v237, 7
  %v239 = vsub.s32 0, %v238
  %v240 = vrot.slane %v235, %v239
  %v242 = vadd.f32 %v225, %v240
  %v243 = vadd.f32 %v228, %v240
  %v244 = vadd.f32 %v231, %v240
  %v245 = vadd.f32 %v234, %v240
  %v246 = vmax.f32 %v242, 0.0
  %v247 = vmax.f32 %v243, 0.0
  %v248 = vmax.f32 %v244, 0.0
  %v249 = vmax.f32 %v245, 0.0
  %250 = vst [vmem:[%s3] sm:$0xff] %v246
  %251 = vst [vmem:[%s3 + $0x8] sm:$0xff] %v247
  %252 = vst [vmem:[%s3 + $0x10] sm:$0xff] %v248
  %253 = vst [vmem:[%s3 + $0x18] sm:$0xff] %v249
  // Predicated region
  $region14: #{model_forward.4} parent=0 // pred_check
    _
  $region15: #{model_forward.4} parent=0 // pred_check_branch
    %255 = sbr.rel (0) target = $region17
  $region16: #{model_forward.4} parent=0 // pred_region
    _
  $region17: #{model_forward.4} parent=0 // pred_fallthru
    _
  // Predicated region
  $region18: #{model_forward.4} parent=0 // pred_check
    _
  $region19: #{model_forward.4} parent=0 // pred_check_branch
    %257 = sbr.rel (0) target = $region21
  $region20: #{model_forward.4} parent=0 // pred_region
    _
  $region21: #{model_forward.4} parent=0 // pred_fallthru
    _

// kernel: model_forward.5
$region0: #{model_forward.5}
  #allocation0 [shape = 'u32[]', space=smem, size = 0x4, offset = 0x4, fixed_abs, tag = 'smem constant byte address 0x4 - core index']
  #allocation1 [shape = 'u32[144,128]{1,0:T(1,128)}', space=vmem, size = 0x12000, scoped, tag = 'internal scratch']
  %s0 = inlined_call_operand.vmem [shape: f32[2,320], index: 0, kind: input, shape index: {}]
  %s1 = inlined_call_operand.vmem [shape: f32[320,128], index: 1, kind: input, shape index: {}]
  %s2 = inlined_call_operand.vmem [shape: f32[1,128], index: 2, kind: input, shape index: {}]
  %s3 = inlined_call_operand.vmem [shape: f32[128,128], index: 3, kind: input, shape index: {}]
  %s4 = inlined_call_operand.vmem [shape: f32[1,128], index: 4, kind: input, shape index: {}]
  %s5 = inlined_call_operand.hbm [shape: f32[2,128], index: 5, kind: output, shape index: {}]
  %s6 = sld [smem:[#allocation0]]
  $region30: #{model_forward.5} parent=0
    _
  %s8 = ssub.s32 1, %s6
  %s9 = scalar_select 0, %s8, %s6
  $region1: #{model_forward.5} parent=0
    #allocation2 [shape = 'u8[1024]{0}', space=vmem, size = 0x400, scoped, tag = 'output window, operand 0, single buffered']
    #allocation3 [shape = 's32[1]{0}', space=sflag, size = 0x4, scoped, tag = 'scoped memory for model_forward.5']
    %10 = vsyncpa [#allocation3], 0
    // Predicated region
    $region2: #{model_forward.5} parent=1 // pred_check
      _
    $region3: #{model_forward.5} parent=1 // pred_check_branch
      %12 = sbr.rel (0) target = $region5
    $region4: #{model_forward.5} parent=1 // pred_region
      _
    $region5: #{model_forward.5} parent=1 // pred_fallthru
      _
    // Predicated region
    $region6: #{model_forward.5} parent=1 // pred_check
      _
    $region7: #{model_forward.5} parent=1 // pred_check_branch
      %14 = sbr.rel (0) target = $region9
    $region8: #{model_forward.5} parent=1 // pred_region
      _
    $region9: #{model_forward.5} parent=1 // pred_fallthru
      _
    // Predicated region
    $region10: #{model_forward.5} parent=1 // pred_check
      _
    $region11: #{model_forward.5} parent=1 // pred_check_branch
      %16 = sbr.rel (0) target = $region13
    $region12: #{model_forward.5} parent=1 // pred_region
      _
    $region13: #{model_forward.5} parent=1 // pred_fallthru
      _
    // Predicated region
    $region14: #{model_forward.5} parent=1 // pred_check
      _
    $region15: #{model_forward.5} parent=1 // pred_check_branch
      %18 = sbr.rel (0) target = $region17
    $region16: #{model_forward.5} parent=1 // pred_region
      _
    $region17: #{model_forward.5} parent=1 // pred_fallthru
      _
    // Predicated region
    $region18: #{model_forward.5} parent=1 // pred_check
      _
    $region19: #{model_forward.5} parent=1 // pred_check_branch
      %20 = sbr.rel (0) target = $region21
    $region20: #{model_forward.5} parent=1 // pred_region
      _
    $region21: #{model_forward.5} parent=1 // pred_fallthru
      _
    %v21 = vld [vmem:[%s0] sm:$0x3f]
    %v22 = vld [vmem:[%s1] sm:$0xff]
    %v23 = vld [vmem:[%s1 + $0x8] sm:$0xff]
    %v24 = vld [vmem:[%s1 + $0x10] sm:$0xff]
    %v25 = vld [vmem:[%s1 + $0x18] sm:$0xff]
    %v26 = vld [vmem:[%s1 + $0x20] sm:$0xff]
    %v27 = vld [vmem:[%s1 + $0x28] sm:$0xff]
    %v28 = vld [vmem:[%s1 + $0x30] sm:$0xff]
    %v29 = vld [vmem:[%s1 + $0x38] sm:$0xff]
    %v30 = vld [vmem:[%s1 + $0x40] sm:$0xff]
    %v31 = vld [vmem:[%s1 + $0x48] sm:$0xff]
    %v32 = vld [vmem:[%s1 + $0x50] sm:$0xff]
    %v33 = vld [vmem:[%s1 + $0x58] sm:$0xff]
    %v34 = vld [vmem:[%s1 + $0x60] sm:$0xff]
    %v35 = vld [vmem:[%s1 + $0x68] sm:$0xff]
    %v36 = vld [vmem:[%s1 + $0x70] sm:$0xff]
    %v37 = vld [vmem:[%s1 + $0x78] sm:$0xff]
    %v38 = vld [vmem:[%s1 + $0x80] sm:$0xff]
    %v39 = vld [vmem:[%s1 + $0x88] sm:$0xff]
    %v40 = vld [vmem:[%s1 + $0x90] sm:$0xff]
    %v41 = vld [vmem:[%s1 + $0x98] sm:$0xff]
    %v42 = vld [vmem:[%s1 + $0xa0] sm:$0xff]
    %v43 = vld [vmem:[%s1 + $0xa8] sm:$0xff]
    %v44 = vld [vmem:[%s1 + $0xb0] sm:$0xff]
    %v45 = vld [vmem:[%s1 + $0xb8] sm:$0xff]
    %v46 = vld [vmem:[%s1 + $0xc0] sm:$0xff]
    %v47 = vld [vmem:[%s1 + $0xc8] sm:$0xff]
    %v48 = vld [vmem:[%s1 + $0xd0] sm:$0xff]
    %v49 = vld [vmem:[%s1 + $0xd8] sm:$0xff]
    %v50 = vld [vmem:[%s1 + $0xe0] sm:$0xff]
    %v51 = vld [vmem:[%s1 + $0xe8] sm:$0xff]
    %v52 = vld [vmem:[%s1 + $0xf0] sm:$0xff]
    %v53 = vld [vmem:[%s1 + $0xf8] sm:$0xff]
    %v54 = vld [vmem:[%s1 + $0x100] sm:$0xff]
    %v55 = vld [vmem:[%s1 + $0x108] sm:$0xff]
    %v56 = vld [vmem:[%s1 + $0x110] sm:$0xff]
    %v57 = vld [vmem:[%s1 + $0x118] sm:$0xff]
    %v58 = vld [vmem:[%s1 + $0x120] sm:$0xff]
    %v59 = vld [vmem:[%s1 + $0x128] sm:$0xff]
    %v60 = vld [vmem:[%s1 + $0x130] sm:$0xff]
    %v61 = vld [vmem:[%s1 + $0x138] sm:$0xff]
    %v62 = vld [vmem:[%s2] sm:$0x1]
    %v64 = vlaneseq
    %v65 = vshrl.u32 %v64, 7
    %v66 = vsub.s32 0, %v65
    %v67 = vrot.slane %v62, %v66
    %v70 = vcombine.high %v21, %v21
    %v72 = vunpack.c.l.s4 1983009808
    %v73 = vunpack.c.0.s8 %v72
    %v74 = vlaneseq
    %v75 = vshrl.u32 %v74, 7
    %v76 = vsub.s32 %v73, %v75
    %v77 = vrot.slane %v21, %v76
    %v79 = vunpack.c.l.s4 1983009808
    %v80 = vunpack.c.0.s8 %v79
    %v81 = vlaneseq
    %v82 = vshrl.u32 %v81, 7
    %v83 = vsub.s32 %v80, %v82
    %v84 = vrot.slane %v70, %v83
    %v85 = vcombine.high %v77, %v77
    %vm88 = vcmask 523264
    %v89 = vsel %vm88, %v84, 0
    %91 = vmatprep.subr.mxu0 0.0
    %92 = vmatpush1.msra.mxu0 %v37
    %93 = vmatprep.subr.mxu0 0.0
    %94 = vmatpush1.msra.mxu0 %v36
    %95 = vmatprep.subr.mxu0 0.0
    %96 = vmatpush1.msra.mxu0 %v35
    %97 = vmatprep.subr.mxu0 0.0
    %98 = vmatpush1.msra.mxu0 %v34
    %99 = vmatprep.subr.mxu0 0.0
    %100 = vmatpush1.msra.mxu0 %v33
    %101 = vmatprep.subr.mxu0 0.0
    %102 = vmatpush1.msra.mxu0 %v32
    %103 = vmatprep.subr.mxu0 0.0
    %104 = vmatpush1.msra.mxu0 %v31
    %105 = vmatprep.subr.mxu0 0.0
    %106 = vmatpush1.msra.mxu0 %v30
    %107 = vmatprep.subr.mxu0 0.0
    %108 = vmatpush1.msra.mxu0 %v29
    %109 = vmatprep.subr.mxu0 0.0
    %110 = vmatpush1.msra.mxu0 %v28
    %111 = vmatprep.subr.mxu0 0.0
    %112 = vmatpush1.msra.mxu0 %v27
    %113 = vmatprep.subr.mxu0 0.0
    %114 = vmatpush1.msra.mxu0 %v26
    %115 = vmatprep.subr.mxu0 0.0
    %116 = vmatpush1.msra.mxu0 %v25
    %117 = vmatprep.subr.mxu0 0.0
    %118 = vmatpush1.msra.mxu0 %v24
    %119 = vmatprep.subr.mxu0 0.0
    %120 = vmatpush1.msra.mxu0 %v23
    %121 = vmatprep.subr.mxu0 0.0
    %122 = vmatpush1.msra.mxu0 %v22
    %123 = vmatprep.subr.mxu0 0.0
    %124 = vmatpush2.msra.mxu0 %v53
    %125 = vmatprep.subr.mxu0 0.0
    %126 = vmatpush2.msra.mxu0 %v52
    %127 = vmatprep.subr.mxu0 0.0
    %128 = vmatpush2.msra.mxu0 %v51
    %129 = vmatprep.subr.mxu0 0.0
    %130 = vmatpush2.msra.mxu0 %v50
    %131 = vmatprep.subr.mxu0 0.0
    %132 = vmatpush2.msra.mxu0 %v49
    %133 = vmatprep.subr.mxu0 0.0
    %134 = vmatpush2.msra.mxu0 %v48
    %135 = vmatprep.subr.mxu0 0.0
    %136 = vmatpush2.msra.mxu0 %v47
    %137 = vmatprep.subr.mxu0 0.0
    %138 = vmatpush2.msra.mxu0 %v46
    %139 = vmatprep.subr.mxu0 0.0
    %140 = vmatpush2.msra.mxu0 %v45
    %141 = vmatprep.subr.mxu0 0.0
    %142 = vmatpush2.msra.mxu0 %v44
    %143 = vmatprep.subr.mxu0 0.0
    %144 = vmatpush2.msra.mxu0 %v43
    %145 = vmatprep.subr.mxu0 0.0
    %146 = vmatpush2.msra.mxu0 %v42
    %147 = vmatprep.subr.mxu0 0.0
    %148 = vmatpush2.msra.mxu0 %v41
    %149 = vmatprep.subr.mxu0 0.0
    %150 = vmatpush2.msra.mxu0 %v40
    %151 = vmatprep.subr.mxu0 0.0
    %152 = vmatpush2.msra.mxu0 %v39
    %153 = vmatprep.subr.mxu0 0.0
    %154 = vmatpush2.msra.mxu0 %v38
    %155 = vmatprep.mubr.f32.mxu0 %v85
    %156 = vmatmul.mubr.f32.gmra.mxu0 %v77
    %v157 = vpop.f32.mrf.mxu0
    %v158 = vadd.f32 %v67, %v157
    %v159 = vpop.f32.mrf.mxu0
    %160 = vdwg.mxu0
    %161 = vmatprep.subr.mxu0 0.0
    %162 = vmatpush1.msra.mxu0 0.0
    %163 = vmatprep.subr.mxu0 0.0
    %164 = vmatpush1.msra.mxu0 0.0
    %165 = vmatprep.subr.mxu0 0.0
    %166 = vmatpush1.msra.mxu0 0.0
    %167 = vmatprep.subr.mxu0 0.0
    %168 = vmatpush1.msra.mxu0 0.0
    %169 = vmatprep.subr.mxu0 0.0
    %170 = vmatpush1.msra.mxu0 0.0
    %171 = vmatprep.subr.mxu0 0.0
    %172 = vmatpush1.msra.mxu0 0.0
    %173 = vmatprep.subr.mxu0 0.0
    %174 = vmatpush1.msra.mxu0 0.0
    %175 = vmatprep.subr.mxu0 0.0
    %176 = vmatpush1.msra.mxu0 0.0
    %177 = vmatprep.subr.mxu0 0.0
    %178 = vmatpush1.msra.mxu0 %v61
    %179 = vmatprep.subr.mxu0 0.0
    %180 = vmatpush1.msra.mxu0 %v60
    %181 = vmatprep.subr.mxu0 0.0
    %182 = vmatpush1.msra.mxu0 %v59
    %183 = vmatprep.subr.mxu0 0.0
    %184 = vmatpush1.msra.mxu0 %v58
    %185 = vmatprep.subr.mxu0 0.0
    %186 = vmatpush1.msra.mxu0 %v57
    %187 = vmatprep.subr.mxu0 0.0
    %188 = vmatpush1.msra.mxu0 %v56
    %189 = vmatprep.subr.mxu0 0.0
    %190 = vmatpush1.msra.mxu0 %v55
    %191 = vmatprep.subr.mxu0 0.0
    %192 = vmatpush1.msra.mxu0 %v54
    %193 = vmatprep.subr.mxu0 0.0
    %194 = vmatpush2.msra.mxu0 0.0
    %195 = vmatprep.subr.mxu0 0.0
    %196 = vmatpush2.msra.mxu0 0.0
    %197 = vmatprep.subr.mxu0 0.0
    %198 = vmatpush2.msra.mxu0 0.0
    %199 = vmatprep.subr.mxu0 0.0
    %200 = vmatpush2.msra.mxu0 0.0
    %201 = vmatprep.subr.mxu0 0.0
    %202 = vmatpush2.msra.mxu0 0.0
    %203 = vmatprep.subr.mxu0 0.0
    %204 = vmatpush2.msra.mxu0 0.0
    %205 = vmatprep.subr.mxu0 0.0
    %206 = vmatpush2.msra.mxu0 0.0
    %207 = vmatprep.subr.mxu0 0.0
    %208 = vmatpush2.msra.mxu0 0.0
    %209 = vmatprep.subr.mxu0 0.0
    %210 = vmatpush2.msra.mxu0 0.0
    %211 = vmatprep.subr.mxu0 0.0
    %212 = vmatpush2.msra.mxu0 0.0
    %213 = vmatprep.subr.mxu0 0.0
    %214 = vmatpush2.msra.mxu0 0.0
    %215 = vmatprep.subr.mxu0 0.0
    %216 = vmatpush2.msra.mxu0 0.0
    %217 = vmatprep.subr.mxu0 0.0
    %218 = vmatpush2.msra.mxu0 0.0
    %219 = vmatprep.subr.mxu0 0.0
    %220 = vmatpush2.msra.mxu0 0.0
    %221 = vmatprep.subr.mxu0 0.0
    %222 = vmatpush2.msra.mxu0 0.0
    %223 = vmatprep.subr.mxu0 0.0
    %224 = vmatpush2.msra.mxu0 0.0
    %225 = vmatprep.mubr.f32.mxu0 0.0
    %226 = vmatmul.mubr.f32.gmra.mxu0 %v89
    %v227 = vpop.f32.mrf.mxu0
    %v228 = vadd.f32 %v158, %v227
    %v229 = vpop.f32.mrf.mxu0
    %230 = vdwg.mxu0
    %v231 = vmax.f32 %v228, 0.0
    %v232 = vld [vmem:[%s3] sm:$0xff]
    %v233 = vld [vmem:[%s3 + $0x8] sm:$0xff]
    %v234 = vld [vmem:[%s3 + $0x10] sm:$0xff]
    %v235 = vld [vmem:[%s3 + $0x18] sm:$0xff]
    %v236 = vld [vmem:[%s3 + $0x20] sm:$0xff]
    %v237 = vld [vmem:[%s3 + $0x28] sm:$0xff]
    %v238 = vld [vmem:[%s3 + $0x30] sm:$0xff]
    %v239 = vld [vmem:[%s3 + $0x38] sm:$0xff]
    %v240 = vld [vmem:[%s3 + $0x40] sm:$0xff]
    %v241 = vld [vmem:[%s3 + $0x48] sm:$0xff]
    %v242 = vld [vmem:[%s3 + $0x50] sm:$0xff]
    %v243 = vld [vmem:[%s3 + $0x58] sm:$0xff]
    %v244 = vld [vmem:[%s3 + $0x60] sm:$0xff]
    %v245 = vld [vmem:[%s3 + $0x68] sm:$0xff]
    %v246 = vld [vmem:[%s3 + $0x70] sm:$0xff]
    %v247 = vld [vmem:[%s3 + $0x78] sm:$0xff]
    %v248 = vld [vmem:[%s4] sm:$0x1]
    %v250 = vlaneseq
    %v251 = vshrl.u32 %v250, 7
    %v252 = vsub.s32 0, %v251
    %v253 = vrot.slane %v248, %v252
    %255 = vmatprep.subr.mxu0 0.0
    %256 = vmatpush1.msra.mxu0 %v247
    %257 = vmatprep.subr.mxu0 0.0
    %258 = vmatpush1.msra.mxu0 %v246
    %259 = vmatprep.subr.mxu0 0.0
    %260 = vmatpush1.msra.mxu0 %v245
    %261 = vmatprep.subr.mxu0 0.0
    %262 = vmatpush1.msra.mxu0 %v244
    %263 = vmatprep.subr.mxu0 0.0
    %264 = vmatpush1.msra.mxu0 %v243
    %265 = vmatprep.subr.mxu0 0.0
    %266 = vmatpush1.msra.mxu0 %v242
    %267 = vmatprep.subr.mxu0 0.0
    %268 = vmatpush1.msra.mxu0 %v241
    %269 = vmatprep.subr.mxu0 0.0
    %270 = vmatpush1.msra.mxu0 %v240
    %271 = vmatprep.subr.mxu0 0.0
    %272 = vmatpush1.msra.mxu0 %v239
    %273 = vmatprep.subr.mxu0 0.0
    %274 = vmatpush1.msra.mxu0 %v238
    %275 = vmatprep.subr.mxu0 0.0
    %276 = vmatpush1.msra.mxu0 %v237
    %277 = vmatprep.subr.mxu0 0.0
    %278 = vmatpush1.msra.mxu0 %v236
    %279 = vmatprep.subr.mxu0 0.0
    %280 = vmatpush1.msra.mxu0 %v235
    %281 = vmatprep.subr.mxu0 0.0
    %282 = vmatpush1.msra.mxu0 %v234
    %283 = vmatprep.subr.mxu0 0.0
    %284 = vmatpush1.msra.mxu0 %v233
    %285 = vmatprep.subr.mxu0 0.0
    %286 = vmatpush1.msra.mxu0 %v232
    %287 = vmatprep.subr.mxu0 0.0
    %288 = vmatpush2.msra.mxu0 0.0
    %289 = vmatprep.subr.mxu0 0.0
    %290 = vmatpush2.msra.mxu0 0.0
    %291 = vmatprep.subr.mxu0 0.0
    %292 = vmatpush2.msra.mxu0 0.0
    %293 = vmatprep.subr.mxu0 0.0
    %294 = vmatpush2.msra.mxu0 0.0
    %295 = vmatprep.subr.mxu0 0.0
    %296 = vmatpush2.msra.mxu0 0.0
    %297 = vmatprep.subr.mxu0 0.0
    %298 = vmatpush2.msra.mxu0 0.0
    %299 = vmatprep.subr.mxu0 0.0
    %300 = vmatpush2.msra.mxu0 0.0
    %301 = vmatprep.subr.mxu0 0.0
    %302 = vmatpush2.msra.mxu0 0.0
    %303 = vmatprep.subr.mxu0 0.0
    %304 = vmatpush2.msra.mxu0 0.0
    %305 = vmatprep.subr.mxu0 0.0
    %306 = vmatpush2.msra.mxu0 0.0
    %307 = vmatprep.subr.mxu0 0.0
    %308 = vmatpush2.msra.mxu0 0.0
    %309 = vmatprep.subr.mxu0 0.0
    %310 = vmatpush2.msra.mxu0 0.0
    %311 = vmatprep.subr.mxu0 0.0
    %312 = vmatpush2.msra.mxu0 0.0
    %313 = vmatprep.subr.mxu0 0.0
    %314 = vmatpush2.msra.mxu0 0.0
    %315 = vmatprep.subr.mxu0 0.0
    %316 = vmatpush2.msra.mxu0 0.0
    %317 = vmatprep.subr.mxu0 0.0
    %318 = vmatpush2.msra.mxu0 0.0
    %319 = vmatprep.mubr.f32.mxu0 0.0
    %320 = vmatmul.mubr.f32.gmra.mxu0 %v231
    %v321 = vpop.f32.mrf.mxu0
    %v322 = vadd.f32 %v253, %v321
    %v323 = vpop.f32.mrf.mxu0
    %324 = vdwg.mxu0
    %vm325 = vcmask 1041408
    %v326 = vsel %vm325, %v322, -inf
    %327 = vmax.xlane.f32.xlu0 %v326
    %v328 = vpop.xlane.xlu0 %327
    %v329 = vsub.f32 %v322, %v328
    %v330 = vmul.f32 %v329, 1.442695
    %v331 = vpow.pop %v330
    %v332 = vsel %vm325, %v331, 0.0
    %333 = vadd.xlane.f32.xlu0 %v332
    %v334 = vpop.xlane.xlu0 %333
    %v335 = vlog2.pop %v334
    %v336 = vmul.f32 %v335, 0.6931472
    %v337 = vadd.f32 %v336, %v328
    %v338 = vsub.f32 %v322, %v337
    %339 = vst [vmem:[#allocation2] sm:$0x3] %v338
    // Predicated region
    $region22: #{model_forward.5} parent=1 // pred_check
      _
    $region23: #{model_forward.5} parent=1 // pred_check_branch
      %341 = sbr.rel (0) target = $region25
    $region24: #{model_forward.5} parent=1 // pred_region
      %s343 = ssub.s32 32, 32
      %344 = vsyncadd [#allocation3], %s343
      %s346 = sshll.u32 [#allocation2], 4
      %s347 = int_to_ptr.vmem [resolvable:$true] %s346
      %349 = dma.vmem_to_hbm [thread:$0]  %s347, 32, %s5, [#allocation3]
    $region25: #{model_forward.5} parent=1 // pred_fallthru
      _
    // Predicated region
    $region26: #{model_forward.5} parent=1 // pred_check
      _
    $region27: #{model_forward.5} parent=1 // pred_check_branch
      %351 = sbr.rel (0) target = $region29
    $region28: #{model_forward.5} parent=1 // pred_region
      %352 = dma.done [#allocation3], 32
    $region29: #{model_forward.5} parent=1 // pred_fallthru
      _
    %353 = vsyncpa [#allocation3], 1

</llo_original>
